<compile_context>
chip_gen: v7x
topology: tpu7x:2x2x1
jax: 0.10.0
libtpu: 0.0.40
codegen_flags: <defaults>
</compile_context>

<pallas_src>
import functools
import math

import jax
import jax.numpy as jnp
from jax import lax
from jax.experimental import pallas as pl
from jax.experimental.pallas import tpu as pltpu

# ----------------------------- configuration -------------------------------
N = 16          # number of graph nodes
DIN = 8         # in_feats
F_OUT = 8       # out_feats
H = 4           # num_heads
EW = 2          # ew_dims
NEG_SLOPE = 0.2
NEG_INF = -1e30


# ------------------------------ Pallas kernel ------------------------------
def _gat_kernel(x_ref, w_ref, alm_ref, arm_ref, aew_ref, ew_ref, adj_ref,
                out_ref, *, num_heads, f_out, ew_dims, neg_slope):
    """Single invocation: all heads processed in one pass, everything in VMEM."""
    x = x_ref[...]                                     # [N, Din]
    w_all = w_ref[...]                                 # [Din, H*F]
    # fused fc: one MXU matmul covers every head
    feat_all = jnp.dot(x, w_all, preferred_element_type=jnp.float32)   # [N, H*F]

    al_m = alm_ref[...]                                # [H, H*F] block-diag attn_l
    ar_m = arm_ref[...]                                # [H, H*F] block-diag attn_r
    adj = adj_ref[...]                                 # [N_dst, N_src]
    edge_mask = adj > 0.0                              # computed once, reused per head

    n = adj.shape[0]
    hf = num_heads * f_out
    # column -> head-block membership, built once with a 2-D iota
    col = lax.broadcasted_iota(jnp.int32, (1, hf), 1)  # [1, H*F]

    rst = jnp.zeros((n, hf), jnp.float32)              # lane-dense accumulator

    for h in range(num_heads):                         # static, fully unrolled
        # er (dst) contribution -> column vector [N, 1]; ar_m zeroes the
        # columns of all other heads, so the full-width reduce is exact.
        er_col = jnp.sum(feat_all * ar_m[h:h + 1, :], axis=-1, keepdims=True)
        # el (src) contribution -> row vector [1, N] via contraction (no transpose)
        el_row = lax.dot_general(al_m[h:h + 1, :], feat_all,
                                 (((1,), (1,)), ((), ())),
                                 preferred_element_type=jnp.float32)

        # raw logits e[dst, src] plus edge-weight attention term
        e = er_col + el_row                            # [N_dst, N_src]
        for k in range(ew_dims):                       # EW is small & static
            e = e + aew_ref[h, k] * ew_ref[h, k]

        # leaky relu + adjacency mask
        e = jnp.where(e >= 0, e, neg_slope * e)
        e = jnp.where(edge_mask, e, NEG_INF)

        # edge softmax over incoming edges (src axis).  Self-loops guarantee a
        # finite row max, so exp(NEG_INF - m) underflows to exactly 0 and no
        # post-exp re-mask is needed (fragile only if self-loops are removed).
        m = jnp.max(e, axis=-1, keepdims=True)
        p = jnp.exp(e - m)
        a = p / jnp.sum(p, axis=-1, keepdims=True)     # [N_dst, N_src]

        # aggregate into head-h columns of the lane-dense result:
        # a @ (feat_all masked to head-h columns) only contributes to those columns.
        in_head = jnp.logical_and(col >= h * f_out, col < (h + 1) * f_out)
        feat_h = jnp.where(in_head, feat_all, 0.0)     # [N, H*F]
        rst = rst + jnp.dot(a, feat_h, preferred_element_type=jnp.float32)

    # elu activation, one pass over all heads, then a single full-width store
    out = jnp.where(rst > 0, rst, jnp.exp(jnp.minimum(rst, 0.0)) - 1.0)
    out_ref[...] = out.astype(out_ref.dtype)


def gat_conv_pallas(x, w, attn_l, attn_r, attn_ew, e_w_dense, adj):
    """Runs the GATConv forward. Returns [N, H, F] (squeezed to [N, F] if H==1)."""
    n, din = x.shape
    h, _, f = w.shape
    ew_dims = attn_ew.shape[-1]
    hf = h * f

    # layout plumbing (parameters only, outside the kernel):
    #  - fc weight fused over heads: W_all[:, h*F+f] = w[h, :, f]
    #  - attn_l / attn_r expanded block-diagonally so the kernel never
    #    lane-slices the fused feature matrix.
    w_all = jnp.transpose(w, (1, 0, 2)).reshape(din, hf)             # [Din, H*F]
    al = attn_l[:, 0, :]                                             # [H, F]
    ar = attn_r[:, 0, :]
    eye_h = jnp.eye(h, dtype=jnp.float32)
    al_m = (eye_h[:, :, None] * al[None, :, :]).reshape(h, hf)       # [H, H*F]
    ar_m = (eye_h[:, :, None] * ar[None, :, :]).reshape(h, hf)       # [H, H*F]

    kernel = functools.partial(_gat_kernel, num_heads=h, f_out=f,
                               ew_dims=ew_dims, neg_slope=NEG_SLOPE)

    out_flat = pl.pallas_call(
        kernel,
        out_shape=jax.ShapeDtypeStruct((n, hf), jnp.float32),
        grid=(1,),
        in_specs=[
            pl.BlockSpec((n, din), lambda i: (0, 0)),                  # x
            pl.BlockSpec((din, hf), lambda i: (0, 0)),                 # fused fc weight
            pl.BlockSpec((h, hf), lambda i: (0, 0)),                   # attn_l (block-diag)
            pl.BlockSpec((h, hf), lambda i: (0, 0)),                   # attn_r (block-diag)
            pl.BlockSpec(memory_space=pltpu.MemorySpace.SMEM),         # attn_ew scalars
            pl.BlockSpec((h, ew_dims, n, n), lambda i: (0, 0, 0, 0)),  # e_w dense
            pl.BlockSpec((n, n), lambda i: (0, 0)),                    # adjacency
        ],
        out_specs=pl.BlockSpec((n, hf), lambda i: (0, 0)),
    )(x, w_all, al_m, ar_m, attn_ew, e_w_dense, adj)

    out = out_flat.reshape(n, h, f)                                    # [N, H, F]
    if h == 1:
        out = out[:, 0, :]
    return out


# ---------------------------- pure-JAX reference ---------------------------
def gat_conv_ref(x, w, attn_l, attn_r, attn_ew, e_w_dense, adj):
    feat = jnp.einsum("nd,hdf->nhf", x, w)                        # [N, H, F]
    al = attn_l[:, 0, :]                                          # [H, F]
    ar = attn_r[:, 0, :]
    el = jnp.einsum("nhf,hf->hn", feat, al)                       # [H, N] (src)
    er = jnp.einsum("nhf,hf->hn", feat, ar)                       # [H, N] (dst)
    ew_term = jnp.einsum("hk,hkvu->hvu", attn_ew, e_w_dense)      # [H, Ndst, Nsrc]
    e = er[:, :, None] + el[:, None, :] + ew_term
    e = jnp.where(e >= 0, e, NEG_SLOPE * e)
    e = jnp.where(adj[None] > 0, e, NEG_INF)
    m = jnp.max(e, axis=2, keepdims=True)
    p = jnp.exp(e - m)
    p = jnp.where(adj[None] > 0, p, 0.0)
    a = p / jnp.sum(p, axis=2, keepdims=True)
    rst = jnp.einsum("hvu,uhf->vhf", a, feat)                     # [N, H, F]
    return jnp.where(rst > 0, rst, jnp.exp(jnp.minimum(rst, 0.0)) - 1.0)


# ------------------------------ parameter init ------------------------------
def xavier_normal(key, shape, fan_in, fan_out, gain):
    std = gain * math.sqrt(2.0 / (fan_in + fan_out))
    return std * jax.random.normal(key, shape, dtype=jnp.float32)


if __name__ == "__main__":
    key = jax.random.PRNGKey(0)
    k_x, k_w, k_al, k_ar, k_aew, k_ew, k_adj = jax.random.split(key, 7)

    gain = math.sqrt(2.0)  # nn.init.calculate_gain('relu')

    # inputs
    x = jax.random.normal(k_x, (N, DIN), dtype=jnp.float32)
    e_w_dense = jax.random.normal(k_ew, (H, EW, N, N), dtype=jnp.float32)
    adj = (jax.random.uniform(k_adj, (N, N)) < 0.3).astype(jnp.float32)
    adj = jnp.maximum(adj, jnp.eye(N, dtype=jnp.float32))          # self-loops

    # parameters (deterministic synthetic init, shapes per __init__)
    w = xavier_normal(k_w, (H, DIN, F_OUT), fan_in=DIN, fan_out=H * F_OUT,
                      gain=gain)                                   # fc weight
    attn_l = xavier_normal(k_al, (H, 1, F_OUT), fan_in=F_OUT, fan_out=H,
                           gain=gain)
    attn_r = xavier_normal(k_ar, (H, 1, F_OUT), fan_in=F_OUT, fan_out=H,
                           gain=gain)
    attn_ew = xavier_normal(k_aew, (H, EW), fan_in=EW, fan_out=H, gain=gain)

    out = gat_conv_pallas(x, w, attn_l, attn_r, attn_ew, e_w_dense, adj)
    out = jax.block_until_ready(out)

    ref = gat_conv_ref(x, w, attn_l, attn_r, attn_ew, e_w_dense, adj)
    assert out.shape == (N, H, F_OUT), out.shape
    assert bool(jnp.allclose(out, ref, atol=2e-3, rtol=2e-3)), "mismatch vs reference"

    print("KERNEL_OK")
</pallas_src>

<mosaic_0001>
module attributes {stable_mosaic.version = 11 : i64} {
  func.func @_gat_kernel(%arg0: i32, %arg1: memref<16x8xf32, #tpu.memory_space<vmem>>, %arg2: memref<8x32xf32, #tpu.memory_space<vmem>>, %arg3: memref<4x32xf32, #tpu.memory_space<vmem>>, %arg4: memref<4x32xf32, #tpu.memory_space<vmem>>, %arg5: memref<4x2xf32, #tpu.memory_space<smem>>, %arg6: memref<4x2x16x16xf32, #tpu.memory_space<vmem>>, %arg7: memref<16x16xf32, #tpu.memory_space<vmem>>, %arg8: memref<16x32xf32, #tpu.memory_space<vmem>>) attributes {dimension_semantics = [#tpu.dimension_semantics<arbitrary>], iteration_bounds = array<i64: 1>, scalar_prefetch = 0 : i64, scratch_operands = 0 : i64, tpu.core_type = #tpu.core_type<tc>, window_params = [{pipeline_mode = #tpu.pipeline_mode<synchronous>, transform_indices = @transform_0, window_bounds = array<i64: 16, 8>}, {pipeline_mode = #tpu.pipeline_mode<synchronous>, transform_indices = @transform_1, window_bounds = array<i64: 8, 32>}, {pipeline_mode = #tpu.pipeline_mode<synchronous>, transform_indices = @transform_2, window_bounds = array<i64: 4, 32>}, {pipeline_mode = #tpu.pipeline_mode<synchronous>, transform_indices = @transform_3, window_bounds = array<i64: 4, 32>}, {transform_indices = @transform_4, window_bounds = array<i64: 4, 2>}, {pipeline_mode = #tpu.pipeline_mode<synchronous>, transform_indices = @transform_5, window_bounds = array<i64: 4, 2, 16, 16>}, {pipeline_mode = #tpu.pipeline_mode<synchronous>, transform_indices = @transform_6, window_bounds = array<i64: 16, 16>}, {pipeline_mode = #tpu.pipeline_mode<synchronous>, transform_indices = @transform_7, window_bounds = array<i64: 16, 32>}]} {
    %c0 = arith.constant 0 : index
    %c0_0 = arith.constant 0 : index
    %0 = vector.load %arg1[%c0, %c0_0] : memref<16x8xf32, #tpu.memory_space<vmem>>, vector<16x8xf32>
    %c0_1 = arith.constant 0 : index
    %c0_2 = arith.constant 0 : index
    %1 = vector.load %arg2[%c0_1, %c0_2] : memref<8x32xf32, #tpu.memory_space<vmem>>, vector<8x32xf32>
    %cst = arith.constant dense<0.000000e+00> : vector<16x32xf32>
    %2 = tpu.matmul %0, %1, %cst {dimension_numbers = #tpu.dot_dimension_numbers<[1], [0], [0], [1], [0, 0, 1, 1], [], []>} : vector<16x8xf32>, vector<8x32xf32>, vector<16x32xf32> -> vector<16x32xf32>
    %c0_3 = arith.constant 0 : index
    %c0_4 = arith.constant 0 : index
    %3 = vector.load %arg3[%c0_3, %c0_4] : memref<4x32xf32, #tpu.memory_space<vmem>>, vector<4x32xf32>
    %c0_5 = arith.constant 0 : index
    %c0_6 = arith.constant 0 : index
    %4 = vector.load %arg4[%c0_5, %c0_6] : memref<4x32xf32, #tpu.memory_space<vmem>>, vector<4x32xf32>
    %c0_7 = arith.constant 0 : index
    %c0_8 = arith.constant 0 : index
    %5 = vector.load %arg7[%c0_7, %c0_8] : memref<16x16xf32, #tpu.memory_space<vmem>>, vector<16x16xf32>
    %cst_9 = arith.constant 0.000000e+00 : f32
    %6 = vector.broadcast %cst_9 : f32 to vector<16x16xf32>
    %7 = arith.cmpf ogt, %5, %6 : vector<16x16xf32>
    %8 = tpu.iota {dimensions = array<i32: 1>} : vector<1x32xi32>
    %cst_10 = arith.constant 0.000000e+00 : f32
    %9 = vector.broadcast %cst_10 : f32 to vector<16x32xf32>
    %10 = vector.extract_strided_slice %4 {offsets = [0, 0], sizes = [1, 32], strides = [1, 1]} : vector<4x32xf32> to vector<1x32xf32>
    %11 = vector.broadcast %10 : vector<1x32xf32> to vector<16x32xf32>
    %12 = arith.mulf %2, %11 : vector<16x32xf32>
    %cst_11 = arith.constant dense<0.000000e+00> : vector<16xf32>
    %13 = vector.multi_reduction <add>, %12, %cst_11 [1] : vector<16x32xf32> to vector<16xf32>
    %14 = vector.shape_cast %13 : vector<16xf32> to vector<16x1xf32>
    %15 = vector.extract_strided_slice %3 {offsets = [0, 0], sizes = [1, 32], strides = [1, 1]} : vector<4x32xf32> to vector<1x32xf32>
    %cst_12 = arith.constant dense<0.000000e+00> : vector<1x16xf32>
    %16 = tpu.matmul %15, %2, %cst_12 {dimension_numbers = #tpu.dot_dimension_numbers<[1], [1], [0], [0], [0, 0, 1, 0], [], []>} : vector<1x32xf32>, vector<16x32xf32>, vector<1x16xf32> -> vector<1x16xf32>
    %17 = vector.broadcast %14 : vector<16x1xf32> to vector<16x16xf32>
    %18 = vector.broadcast %16 : vector<1x16xf32> to vector<16x16xf32>
    %19 = arith.addf %17, %18 : vector<16x16xf32>
    %c0_13 = arith.constant 0 : index
    %c0_14 = arith.constant 0 : index
    %20 = memref.load %arg5[%c0_13, %c0_14] : memref<4x2xf32, #tpu.memory_space<smem>>
    %c0_15 = arith.constant 0 : index
    %c0_16 = arith.constant 0 : index
    %c0_17 = arith.constant 0 : index
    %c0_18 = arith.constant 0 : index
    %21 = vector.load %arg6[%c0_15, %c0_16, %c0_17, %c0_18] : memref<4x2x16x16xf32, #tpu.memory_space<vmem>>, vector<1x1x16x16xf32>
    %22 = vector.shape_cast %21 : vector<1x1x16x16xf32> to vector<16x16xf32>
    %23 = vector.broadcast %20 : f32 to vector<16x16xf32>
    %24 = arith.mulf %23, %22 : vector<16x16xf32>
    %25 = arith.addf %19, %24 : vector<16x16xf32>
    %c0_19 = arith.constant 0 : index
    %c1 = arith.constant 1 : index
    %26 = memref.load %arg5[%c0_19, %c1] : memref<4x2xf32, #tpu.memory_space<smem>>
    %c0_20 = arith.constant 0 : index
    %c1_21 = arith.constant 1 : index
    %c0_22 = arith.constant 0 : index
    %c0_23 = arith.constant 0 : index
    %27 = vector.load %arg6[%c0_20, %c1_21, %c0_22, %c0_23] : memref<4x2x16x16xf32, #tpu.memory_space<vmem>>, vector<1x1x16x16xf32>
    %28 = vector.shape_cast %27 : vector<1x1x16x16xf32> to vector<16x16xf32>
    %29 = vector.broadcast %26 : f32 to vector<16x16xf32>
    %30 = arith.mulf %29, %28 : vector<16x16xf32>
    %31 = arith.addf %25, %30 : vector<16x16xf32>
    %cst_24 = arith.constant 0.000000e+00 : f32
    %32 = vector.broadcast %cst_24 : f32 to vector<16x16xf32>
    %33 = arith.cmpf oge, %31, %32 : vector<16x16xf32>
    %cst_25 = arith.constant 2.000000e-01 : f32
    %34 = vector.broadcast %cst_25 : f32 to vector<16x16xf32>
    %35 = arith.mulf %34, %31 : vector<16x16xf32>
    %36 = arith.select %33, %31, %35 : vector<16x16xi1>, vector<16x16xf32>
    %cst_26 = arith.constant -1.000000e+30 : f32
    %37 = vector.broadcast %cst_26 : f32 to vector<16x16xf32>
    %38 = arith.select %7, %36, %37 : vector<16x16xi1>, vector<16x16xf32>
    %cst_27 = arith.constant dense<0xFF800000> : vector<16xf32>
    %39 = vector.multi_reduction <maximumf>, %38, %cst_27 [1] : vector<16x16xf32> to vector<16xf32>
    %40 = vector.shape_cast %39 : vector<16xf32> to vector<16x1xf32>
    %41 = vector.broadcast %40 : vector<16x1xf32> to vector<16x16xf32>
    %42 = arith.subf %38, %41 : vector<16x16xf32>
    %43 = math.exp %42 : vector<16x16xf32>
    %cst_28 = arith.constant dense<0.000000e+00> : vector<16xf32>
    %44 = vector.multi_reduction <add>, %43, %cst_28 [1] : vector<16x16xf32> to vector<16xf32>
    %45 = vector.shape_cast %44 : vector<16xf32> to vector<16x1xf32>
    %46 = vector.broadcast %45 : vector<16x1xf32> to vector<16x16xf32>
    %47 = arith.divf %43, %46 : vector<16x16xf32>
    %c0_i32 = arith.constant 0 : i32
    %48 = vector.broadcast %c0_i32 : i32 to vector<1x32xi32>
    %49 = arith.cmpi sge, %8, %48 : vector<1x32xi32>
    %c8_i32 = arith.constant 8 : i32
    %50 = vector.broadcast %c8_i32 : i32 to vector<1x32xi32>
    %51 = arith.cmpi slt, %8, %50 : vector<1x32xi32>
    %52 = arith.andi %49, %51 : vector<1x32xi1>
    %cst_29 = arith.constant 0.000000e+00 : f32
    %53 = vector.shape_cast %52 : vector<1x32xi1> to vector<1x32xi1>
    %54 = vector.broadcast %53 : vector<1x32xi1> to vector<16x32xi1>
    %55 = vector.broadcast %cst_29 : f32 to vector<16x32xf32>
    %56 = arith.select %54, %2, %55 : vector<16x32xi1>, vector<16x32xf32>
    %cst_30 = arith.constant dense<0.000000e+00> : vector<16x32xf32>
    %57 = tpu.matmul %47, %56, %cst_30 {dimension_numbers = #tpu.dot_dimension_numbers<[1], [0], [0], [1], [0, 0, 1, 1], [], []>} : vector<16x16xf32>, vector<16x32xf32>, vector<16x32xf32> -> vector<16x32xf32>
    %58 = arith.addf %9, %57 : vector<16x32xf32>
    %59 = vector.extract_strided_slice %4 {offsets = [1, 0], sizes = [1, 32], strides = [1, 1]} : vector<4x32xf32> to vector<1x32xf32>
    %60 = vector.broadcast %59 : vector<1x32xf32> to vector<16x32xf32>
    %61 = arith.mulf %2, %60 : vector<16x32xf32>
    %cst_31 = arith.constant dense<0.000000e+00> : vector<16xf32>
    %62 = vector.multi_reduction <add>, %61, %cst_31 [1] : vector<16x32xf32> to vector<16xf32>
    %63 = vector.shape_cast %62 : vector<16xf32> to vector<16x1xf32>
    %64 = vector.extract_strided_slice %3 {offsets = [1, 0], sizes = [1, 32], strides = [1, 1]} : vector<4x32xf32> to vector<1x32xf32>
    %cst_32 = arith.constant dense<0.000000e+00> : vector<1x16xf32>
    %65 = tpu.matmul %64, %2, %cst_32 {dimension_numbers = #tpu.dot_dimension_numbers<[1], [1], [0], [0], [0, 0, 1, 0], [], []>} : vector<1x32xf32>, vector<16x32xf32>, vector<1x16xf32> -> vector<1x16xf32>
    %66 = vector.broadcast %63 : vector<16x1xf32> to vector<16x16xf32>
    %67 = vector.broadcast %65 : vector<1x16xf32> to vector<16x16xf32>
    %68 = arith.addf %66, %67 : vector<16x16xf32>
    %c1_33 = arith.constant 1 : index
    %c0_34 = arith.constant 0 : index
    %69 = memref.load %arg5[%c1_33, %c0_34] : memref<4x2xf32, #tpu.memory_space<smem>>
    %c1_35 = arith.constant 1 : index
    %c0_36 = arith.constant 0 : index
    %c0_37 = arith.constant 0 : index
    %c0_38 = arith.constant 0 : index
    %70 = vector.load %arg6[%c1_35, %c0_36, %c0_37, %c0_38] : memref<4x2x16x16xf32, #tpu.memory_space<vmem>>, vector<1x1x16x16xf32>
    %71 = vector.shape_cast %70 : vector<1x1x16x16xf32> to vector<16x16xf32>
    %72 = vector.broadcast %69 : f32 to vector<16x16xf32>
    %73 = arith.mulf %72, %71 : vector<16x16xf32>
    %74 = arith.addf %68, %73 : vector<16x16xf32>
    %c1_39 = arith.constant 1 : index
    %c1_40 = arith.constant 1 : index
    %75 = memref.load %arg5[%c1_39, %c1_40] : memref<4x2xf32, #tpu.memory_space<smem>>
    %c1_41 = arith.constant 1 : index
    %c1_42 = arith.constant 1 : index
    %c0_43 = arith.constant 0 : index
    %c0_44 = arith.constant 0 : index
    %76 = vector.load %arg6[%c1_41, %c1_42, %c0_43, %c0_44] : memref<4x2x16x16xf32, #tpu.memory_space<vmem>>, vector<1x1x16x16xf32>
    %77 = vector.shape_cast %76 : vector<1x1x16x16xf32> to vector<16x16xf32>
    %78 = vector.broadcast %75 : f32 to vector<16x16xf32>
    %79 = arith.mulf %78, %77 : vector<16x16xf32>
    %80 = arith.addf %74, %79 : vector<16x16xf32>
    %cst_45 = arith.constant 0.000000e+00 : f32
    %81 = vector.broadcast %cst_45 : f32 to vector<16x16xf32>
    %82 = arith.cmpf oge, %80, %81 : vector<16x16xf32>
    %cst_46 = arith.constant 2.000000e-01 : f32
    %83 = vector.broadcast %cst_46 : f32 to vector<16x16xf32>
    %84 = arith.mulf %83, %80 : vector<16x16xf32>
    %85 = arith.select %82, %80, %84 : vector<16x16xi1>, vector<16x16xf32>
    %cst_47 = arith.constant -1.000000e+30 : f32
    %86 = vector.broadcast %cst_47 : f32 to vector<16x16xf32>
    %87 = arith.select %7, %85, %86 : vector<16x16xi1>, vector<16x16xf32>
    %cst_48 = arith.constant dense<0xFF800000> : vector<16xf32>
    %88 = vector.multi_reduction <maximumf>, %87, %cst_48 [1] : vector<16x16xf32> to vector<16xf32>
    %89 = vector.shape_cast %88 : vector<16xf32> to vector<16x1xf32>
    %90 = vector.broadcast %89 : vector<16x1xf32> to vector<16x16xf32>
    %91 = arith.subf %87, %90 : vector<16x16xf32>
    %92 = math.exp %91 : vector<16x16xf32>
    %cst_49 = arith.constant dense<0.000000e+00> : vector<16xf32>
    %93 = vector.multi_reduction <add>, %92, %cst_49 [1] : vector<16x16xf32> to vector<16xf32>
    %94 = vector.shape_cast %93 : vector<16xf32> to vector<16x1xf32>
    %95 = vector.broadcast %94 : vector<16x1xf32> to vector<16x16xf32>
    %96 = arith.divf %92, %95 : vector<16x16xf32>
    %c8_i32_50 = arith.constant 8 : i32
    %97 = vector.broadcast %c8_i32_50 : i32 to vector<1x32xi32>
    %98 = arith.cmpi sge, %8, %97 : vector<1x32xi32>
    %c16_i32 = arith.constant 16 : i32
    %99 = vector.broadcast %c16_i32 : i32 to vector<1x32xi32>
    %100 = arith.cmpi slt, %8, %99 : vector<1x32xi32>
    %101 = arith.andi %98, %100 : vector<1x32xi1>
    %cst_51 = arith.constant 0.000000e+00 : f32
    %102 = vector.shape_cast %101 : vector<1x32xi1> to vector<1x32xi1>
    %103 = vector.broadcast %102 : vector<1x32xi1> to vector<16x32xi1>
    %104 = vector.broadcast %cst_51 : f32 to vector<16x32xf32>
    %105 = arith.select %103, %2, %104 : vector<16x32xi1>, vector<16x32xf32>
    %cst_52 = arith.constant dense<0.000000e+00> : vector<16x32xf32>
    %106 = tpu.matmul %96, %105, %cst_52 {dimension_numbers = #tpu.dot_dimension_numbers<[1], [0], [0], [1], [0, 0, 1, 1], [], []>} : vector<16x16xf32>, vector<16x32xf32>, vector<16x32xf32> -> vector<16x32xf32>
    %107 = arith.addf %58, %106 : vector<16x32xf32>
    %108 = vector.extract_strided_slice %4 {offsets = [2, 0], sizes = [1, 32], strides = [1, 1]} : vector<4x32xf32> to vector<1x32xf32>
    %109 = vector.broadcast %108 : vector<1x32xf32> to vector<16x32xf32>
    %110 = arith.mulf %2, %109 : vector<16x32xf32>
    %cst_53 = arith.constant dense<0.000000e+00> : vector<16xf32>
    %111 = vector.multi_reduction <add>, %110, %cst_53 [1] : vector<16x32xf32> to vector<16xf32>
    %112 = vector.shape_cast %111 : vector<16xf32> to vector<16x1xf32>
    %113 = vector.extract_strided_slice %3 {offsets = [2, 0], sizes = [1, 32], strides = [1, 1]} : vector<4x32xf32> to vector<1x32xf32>
    %cst_54 = arith.constant dense<0.000000e+00> : vector<1x16xf32>
    %114 = tpu.matmul %113, %2, %cst_54 {dimension_numbers = #tpu.dot_dimension_numbers<[1], [1], [0], [0], [0, 0, 1, 0], [], []>} : vector<1x32xf32>, vector<16x32xf32>, vector<1x16xf32> -> vector<1x16xf32>
    %115 = vector.broadcast %112 : vector<16x1xf32> to vector<16x16xf32>
    %116 = vector.broadcast %114 : vector<1x16xf32> to vector<16x16xf32>
    %117 = arith.addf %115, %116 : vector<16x16xf32>
    %c2 = arith.constant 2 : index
    %c0_55 = arith.constant 0 : index
    %118 = memref.load %arg5[%c2, %c0_55] : memref<4x2xf32, #tpu.memory_space<smem>>
    %c2_56 = arith.constant 2 : index
    %c0_57 = arith.constant 0 : index
    %c0_58 = arith.constant 0 : index
    %c0_59 = arith.constant 0 : index
    %119 = vector.load %arg6[%c2_56, %c0_57, %c0_58, %c0_59] : memref<4x2x16x16xf32, #tpu.memory_space<vmem>>, vector<1x1x16x16xf32>
    %120 = vector.shape_cast %119 : vector<1x1x16x16xf32> to vector<16x16xf32>
    %121 = vector.broadcast %118 : f32 to vector<16x16xf32>
    %122 = arith.mulf %121, %120 : vector<16x16xf32>
    %123 = arith.addf %117, %122 : vector<16x16xf32>
    %c2_60 = arith.constant 2 : index
    %c1_61 = arith.constant 1 : index
    %124 = memref.load %arg5[%c2_60, %c1_61] : memref<4x2xf32, #tpu.memory_space<smem>>
    %c2_62 = arith.constant 2 : index
    %c1_63 = arith.constant 1 : index
    %c0_64 = arith.constant 0 : index
    %c0_65 = arith.constant 0 : index
    %125 = vector.load %arg6[%c2_62, %c1_63, %c0_64, %c0_65] : memref<4x2x16x16xf32, #tpu.memory_space<vmem>>, vector<1x1x16x16xf32>
    %126 = vector.shape_cast %125 : vector<1x1x16x16xf32> to vector<16x16xf32>
    %127 = vector.broadcast %124 : f32 to vector<16x16xf32>
    %128 = arith.mulf %127, %126 : vector<16x16xf32>
    %129 = arith.addf %123, %128 : vector<16x16xf32>
    %cst_66 = arith.constant 0.000000e+00 : f32
    %130 = vector.broadcast %cst_66 : f32 to vector<16x16xf32>
    %131 = arith.cmpf oge, %129, %130 : vector<16x16xf32>
    %cst_67 = arith.constant 2.000000e-01 : f32
    %132 = vector.broadcast %cst_67 : f32 to vector<16x16xf32>
    %133 = arith.mulf %132, %129 : vector<16x16xf32>
    %134 = arith.select %131, %129, %133 : vector<16x16xi1>, vector<16x16xf32>
    %cst_68 = arith.constant -1.000000e+30 : f32
    %135 = vector.broadcast %cst_68 : f32 to vector<16x16xf32>
    %136 = arith.select %7, %134, %135 : vector<16x16xi1>, vector<16x16xf32>
    %cst_69 = arith.constant dense<0xFF800000> : vector<16xf32>
    %137 = vector.multi_reduction <maximumf>, %136, %cst_69 [1] : vector<16x16xf32> to vector<16xf32>
    %138 = vector.shape_cast %137 : vector<16xf32> to vector<16x1xf32>
    %139 = vector.broadcast %138 : vector<16x1xf32> to vector<16x16xf32>
    %140 = arith.subf %136, %139 : vector<16x16xf32>
    %141 = math.exp %140 : vector<16x16xf32>
    %cst_70 = arith.constant dense<0.000000e+00> : vector<16xf32>
    %142 = vector.multi_reduction <add>, %141, %cst_70 [1] : vector<16x16xf32> to vector<16xf32>
    %143 = vector.shape_cast %142 : vector<16xf32> to vector<16x1xf32>
    %144 = vector.broadcast %143 : vector<16x1xf32> to vector<16x16xf32>
    %145 = arith.divf %141, %144 : vector<16x16xf32>
    %c16_i32_71 = arith.constant 16 : i32
    %146 = vector.broadcast %c16_i32_71 : i32 to vector<1x32xi32>
    %147 = arith.cmpi sge, %8, %146 : vector<1x32xi32>
    %c24_i32 = arith.constant 24 : i32
    %148 = vector.broadcast %c24_i32 : i32 to vector<1x32xi32>
    %149 = arith.cmpi slt, %8, %148 : vector<1x32xi32>
    %150 = arith.andi %147, %149 : vector<1x32xi1>
    %cst_72 = arith.constant 0.000000e+00 : f32
    %151 = vector.shape_cast %150 : vector<1x32xi1> to vector<1x32xi1>
    %152 = vector.broadcast %151 : vector<1x32xi1> to vector<16x32xi1>
    %153 = vector.broadcast %cst_72 : f32 to vector<16x32xf32>
    %154 = arith.select %152, %2, %153 : vector<16x32xi1>, vector<16x32xf32>
    %cst_73 = arith.constant dense<0.000000e+00> : vector<16x32xf32>
    %155 = tpu.matmul %145, %154, %cst_73 {dimension_numbers = #tpu.dot_dimension_numbers<[1], [0], [0], [1], [0, 0, 1, 1], [], []>} : vector<16x16xf32>, vector<16x32xf32>, vector<16x32xf32> -> vector<16x32xf32>
    %156 = arith.addf %107, %155 : vector<16x32xf32>
    %157 = vector.extract_strided_slice %4 {offsets = [3, 0], sizes = [1, 32], strides = [1, 1]} : vector<4x32xf32> to vector<1x32xf32>
    %158 = vector.broadcast %157 : vector<1x32xf32> to vector<16x32xf32>
    %159 = arith.mulf %2, %158 : vector<16x32xf32>
    %cst_74 = arith.constant dense<0.000000e+00> : vector<16xf32>
    %160 = vector.multi_reduction <add>, %159, %cst_74 [1] : vector<16x32xf32> to vector<16xf32>
    %161 = vector.shape_cast %160 : vector<16xf32> to vector<16x1xf32>
    %162 = vector.extract_strided_slice %3 {offsets = [3, 0], sizes = [1, 32], strides = [1, 1]} : vector<4x32xf32> to vector<1x32xf32>
    %cst_75 = arith.constant dense<0.000000e+00> : vector<1x16xf32>
    %163 = tpu.matmul %162, %2, %cst_75 {dimension_numbers = #tpu.dot_dimension_numbers<[1], [1], [0], [0], [0, 0, 1, 0], [], []>} : vector<1x32xf32>, vector<16x32xf32>, vector<1x16xf32> -> vector<1x16xf32>
    %164 = vector.broadcast %161 : vector<16x1xf32> to vector<16x16xf32>
    %165 = vector.broadcast %163 : vector<1x16xf32> to vector<16x16xf32>
    %166 = arith.addf %164, %165 : vector<16x16xf32>
    %c3 = arith.constant 3 : index
    %c0_76 = arith.constant 0 : index
    %167 = memref.load %arg5[%c3, %c0_76] : memref<4x2xf32, #tpu.memory_space<smem>>
    %c3_77 = arith.constant 3 : index
    %c0_78 = arith.constant 0 : index
    %c0_79 = arith.constant 0 : index
    %c0_80 = arith.constant 0 : index
    %168 = vector.load %arg6[%c3_77, %c0_78, %c0_79, %c0_80] : memref<4x2x16x16xf32, #tpu.memory_space<vmem>>, vector<1x1x16x16xf32>
    %169 = vector.shape_cast %168 : vector<1x1x16x16xf32> to vector<16x16xf32>
    %170 = vector.broadcast %167 : f32 to vector<16x16xf32>
    %171 = arith.mulf %170, %169 : vector<16x16xf32>
    %172 = arith.addf %166, %171 : vector<16x16xf32>
    %c3_81 = arith.constant 3 : index
    %c1_82 = arith.constant 1 : index
    %173 = memref.load %arg5[%c3_81, %c1_82] : memref<4x2xf32, #tpu.memory_space<smem>>
    %c3_83 = arith.constant 3 : index
    %c1_84 = arith.constant 1 : index
    %c0_85 = arith.constant 0 : index
    %c0_86 = arith.constant 0 : index
    %174 = vector.load %arg6[%c3_83, %c1_84, %c0_85, %c0_86] : memref<4x2x16x16xf32, #tpu.memory_space<vmem>>, vector<1x1x16x16xf32>
    %175 = vector.shape_cast %174 : vector<1x1x16x16xf32> to vector<16x16xf32>
    %176 = vector.broadcast %173 : f32 to vector<16x16xf32>
    %177 = arith.mulf %176, %175 : vector<16x16xf32>
    %178 = arith.addf %172, %177 : vector<16x16xf32>
    %cst_87 = arith.constant 0.000000e+00 : f32
    %179 = vector.broadcast %cst_87 : f32 to vector<16x16xf32>
    %180 = arith.cmpf oge, %178, %179 : vector<16x16xf32>
    %cst_88 = arith.constant 2.000000e-01 : f32
    %181 = vector.broadcast %cst_88 : f32 to vector<16x16xf32>
    %182 = arith.mulf %181, %178 : vector<16x16xf32>
    %183 = arith.select %180, %178, %182 : vector<16x16xi1>, vector<16x16xf32>
    %cst_89 = arith.constant -1.000000e+30 : f32
    %184 = vector.broadcast %cst_89 : f32 to vector<16x16xf32>
    %185 = arith.select %7, %183, %184 : vector<16x16xi1>, vector<16x16xf32>
    %cst_90 = arith.constant dense<0xFF800000> : vector<16xf32>
    %186 = vector.multi_reduction <maximumf>, %185, %cst_90 [1] : vector<16x16xf32> to vector<16xf32>
    %187 = vector.shape_cast %186 : vector<16xf32> to vector<16x1xf32>
    %188 = vector.broadcast %187 : vector<16x1xf32> to vector<16x16xf32>
    %189 = arith.subf %185, %188 : vector<16x16xf32>
    %190 = math.exp %189 : vector<16x16xf32>
    %cst_91 = arith.constant dense<0.000000e+00> : vector<16xf32>
    %191 = vector.multi_reduction <add>, %190, %cst_91 [1] : vector<16x16xf32> to vector<16xf32>
    %192 = vector.shape_cast %191 : vector<16xf32> to vector<16x1xf32>
    %193 = vector.broadcast %192 : vector<16x1xf32> to vector<16x16xf32>
    %194 = arith.divf %190, %193 : vector<16x16xf32>
    %c24_i32_92 = arith.constant 24 : i32
    %195 = vector.broadcast %c24_i32_92 : i32 to vector<1x32xi32>
    %196 = arith.cmpi sge, %8, %195 : vector<1x32xi32>
    %c32_i32 = arith.constant 32 : i32
    %197 = vector.broadcast %c32_i32 : i32 to vector<1x32xi32>
    %198 = arith.cmpi slt, %8, %197 : vector<1x32xi32>
    %199 = arith.andi %196, %198 : vector<1x32xi1>
    %cst_93 = arith.constant 0.000000e+00 : f32
    %200 = vector.shape_cast %199 : vector<1x32xi1> to vector<1x32xi1>
    %201 = vector.broadcast %200 : vector<1x32xi1> to vector<16x32xi1>
    %202 = vector.broadcast %cst_93 : f32 to vector<16x32xf32>
    %203 = arith.select %201, %2, %202 : vector<16x32xi1>, vector<16x32xf32>
    %cst_94 = arith.constant dense<0.000000e+00> : vector<16x32xf32>
    %204 = tpu.matmul %194, %203, %cst_94 {dimension_numbers = #tpu.dot_dimension_numbers<[1], [0], [0], [1], [0, 0, 1, 1], [], []>} : vector<16x16xf32>, vector<16x32xf32>, vector<16x32xf32> -> vector<16x32xf32>
    %205 = arith.addf %156, %204 : vector<16x32xf32>
    %cst_95 = arith.constant 0.000000e+00 : f32
    %206 = vector.broadcast %cst_95 : f32 to vector<16x32xf32>
    %207 = arith.cmpf ogt, %205, %206 : vector<16x32xf32>
    %cst_96 = arith.constant 0.000000e+00 : f32
    %208 = vector.broadcast %cst_96 : f32 to vector<16x32xf32>
    %209 = arith.minimumf %205, %208 : vector<16x32xf32>
    %210 = math.exp %209 : vector<16x32xf32>
    %cst_97 = arith.constant 1.000000e+00 : f32
    %211 = vector.broadcast %cst_97 : f32 to vector<16x32xf32>
    %212 = arith.subf %210, %211 : vector<16x32xf32>
    %213 = arith.select %207, %205, %212 : vector<16x32xi1>, vector<16x32xf32>
    %c0_98 = arith.constant 0 : index
    %c0_99 = arith.constant 0 : index
    %214 = vector.load %arg8[%c0_98, %c0_99] : memref<16x32xf32, #tpu.memory_space<vmem>>, vector<16x32xf32>
    tpu.vector_store %arg8[%c0_98, %c0_99], %213 {strides = array<i32>} : memref<16x32xf32, #tpu.memory_space<vmem>>, vector<16x32xf32>,
    return
  }
  func.func @transform_0(%arg0: i32) -> (i32, i32) {
    %c0_i32 = arith.constant 0 : i32
    %c0_i32_0 = arith.constant 0 : i32
    %c0_i32_1 = arith.constant 0 : i32
    return %c0_i32, %c0_i32_0 : i32, i32
  }
  func.func @transform_1(%arg0: i32) -> (i32, i32) {
    %c0_i32 = arith.constant 0 : i32
    %c0_i32_0 = arith.constant 0 : i32
    %c0_i32_1 = arith.constant 0 : i32
    return %c0_i32, %c0_i32_0 : i32, i32
  }
  func.func @transform_2(%arg0: i32) -> (i32, i32) {
    %c0_i32 = arith.constant 0 : i32
    %c0_i32_0 = arith.constant 0 : i32
    %c0_i32_1 = arith.constant 0 : i32
    return %c0_i32, %c0_i32_0 : i32, i32
  }
  func.func @transform_3(%arg0: i32) -> (i32, i32) {
    %c0_i32 = arith.constant 0 : i32
    %c0_i32_0 = arith.constant 0 : i32
    %c0_i32_1 = arith.constant 0 : i32
    return %c0_i32, %c0_i32_0 : i32, i32
  }
  func.func @transform_4(%arg0: i32) -> (i32, i32) {
    %c0_i32 = arith.constant 0 : i32
    %c0_i32_0 = arith.constant 0 : i32
    %c0_i32_1 = arith.constant 0 : i32
    return %c0_i32, %c0_i32_0 : i32, i32
  }
  func.func @transform_5(%arg0: i32) -> (i32, i32, i32, i32) {
    %c0_i32 = arith.constant 0 : i32
    %c0_i32_0 = arith.constant 0 : i32
    %c0_i32_1 = arith.constant 0 : i32
    %c0_i32_2 = arith.constant 0 : i32
    %c0_i32_3 = arith.constant 0 : i32
    return %c0_i32, %c0_i32_0, %c0_i32_1, %c0_i32_2 : i32, i32, i32, i32
  }
  func.func @transform_6(%arg0: i32) -> (i32, i32) {
    %c0_i32 = arith.constant 0 : i32
    %c0_i32_0 = arith.constant 0 : i32
    %c0_i32_1 = arith.constant 0 : i32
    return %c0_i32, %c0_i32_0 : i32, i32
  }
  func.func @transform_7(%arg0: i32) -> (i32, i32) {
    %c0_i32 = arith.constant 0 : i32
    %c0_i32_0 = arith.constant 0 : i32
    %c0_i32_1 = arith.constant 0 : i32
    return %c0_i32, %c0_i32_0 : i32, i32
  }
}

</mosaic_0001>

<llo_original>
// kernel: tpu_custom_call.1
$region0: #{tpu_custom_call.1}
  #allocation0 [shape = 'u32[]', space=smem, size = 0x4, offset = 0x4, fixed_abs, tag = 'smem constant byte address 0x4 - core index']
  #allocation1 [shape = 'u32[144,128]{1,0:T(1,128)}', space=vmem, size = 0x12000, scoped, tag = 'internal scratch']
  %s0 = inlined_call_operand.vmem [shape: f32[16,8], index: 0, kind: input, shape index: {}]
  %s1 = inlined_call_operand.vmem [shape: f32[8,32], index: 1, kind: input, shape index: {}]
  %s2 = inlined_call_operand.vmem [shape: f32[4,32], index: 2, kind: input, shape index: {}]
  %s3 = inlined_call_operand.vmem [shape: f32[4,32], index: 3, kind: input, shape index: {}]
  %s4 = inlined_call_operand.vmem [shape: f32[4,2], index: 4, kind: input, shape index: {}]
  %s5 = inlined_call_operand.hbm [shape: f32[4,2,16,16], index: 5, kind: input, shape index: {}]
  %s6 = inlined_call_operand.vmem [shape: f32[16,16], index: 6, kind: input, shape index: {}]
  %s7 = inlined_call_operand.hbm [shape: f32[16,32], index: 7, kind: output, shape index: {}]
  %s8 = sld [smem:[#allocation0]]
  $region46: #{tpu_custom_call.1} parent=0
    _
  %s10 = ssub.s32 1, %s8
  %s11 = scalar_select 0, %s10, %s8
  $region1: #{tpu_custom_call.1} parent=0
    #allocation2 [shape = 'u8[2048]{0}', space=smem, size = 0x800, scoped, tag = 'input window, operand 4, single buffered']
    #allocation3 [shape = 's32[1]{0}', space=sflag, size = 0x4, scoped, tag = 'scoped memory for tpu_custom_call.1']
    #allocation4 [shape = 's32[1]{0}', space=sflag, size = 0x4, scoped, tag = 'scoped memory for tpu_custom_call.1']
    #allocation5 [shape = 's32[1]{0}', space=sflag, size = 0x4, scoped, tag = 'scoped memory for tpu_custom_call.1']
    #allocation6 [shape = 'u8[65536]{0}', space=vmem, size = 0x10000, scoped, tag = 'input window, operand 5, single buffered']
    #allocation7 [shape = 'u8[8192]{0}', space=vmem, size = 0x2000, scoped, tag = 'output window, operand 0, single buffered']
    %12 = vsyncpa [#allocation5], 0
    %13 = vsyncpa [#allocation3], 0
    %14 = vsyncpa [#allocation4], 0
    // Predicated region
    $region2: #{tpu_custom_call.1} parent=1 // pred_check
      _
    $region3: #{tpu_custom_call.1} parent=1 // pred_check_branch
      %16 = sbr.rel (0) target = $region5
    $region4: #{tpu_custom_call.1} parent=1 // pred_region
      _
    $region5: #{tpu_custom_call.1} parent=1 // pred_fallthru
      _
    // Predicated region
    $region6: #{tpu_custom_call.1} parent=1 // pred_check
      _
    $region7: #{tpu_custom_call.1} parent=1 // pred_check_branch
      %18 = sbr.rel (0) target = $region9
    $region8: #{tpu_custom_call.1} parent=1 // pred_region
      _
    $region9: #{tpu_custom_call.1} parent=1 // pred_fallthru
      _
    // Predicated region
    $region10: #{tpu_custom_call.1} parent=1 // pred_check
      _
    $region11: #{tpu_custom_call.1} parent=1 // pred_check_branch
      %20 = sbr.rel (0) target = $region13
    $region12: #{tpu_custom_call.1} parent=1 // pred_region
      _
    $region13: #{tpu_custom_call.1} parent=1 // pred_fallthru
      _
    // Predicated region
    $region14: #{tpu_custom_call.1} parent=1 // pred_check
      _
    $region15: #{tpu_custom_call.1} parent=1 // pred_check_branch
      %22 = sbr.rel (0) target = $region17
    $region16: #{tpu_custom_call.1} parent=1 // pred_region
      _
    $region17: #{tpu_custom_call.1} parent=1 // pred_fallthru
      _
    // Predicated region
    $region18: #{tpu_custom_call.1} parent=1 // pred_check
      _
    $region19: #{tpu_custom_call.1} parent=1 // pred_check_branch
      %24 = sbr.rel (0) target = $region21
    $region20: #{tpu_custom_call.1} parent=1 // pred_region
      %s26 = ssub.s32 64, 64
      %27 = vsyncadd [#allocation5], %s26
      %s29 = sshll.u32 %s4, 4
      %s30 = int_to_ptr.vmem [resolvable:$true] %s29
      %32 = dma.vmem_to_smem %s30, 64, [#allocation2], [#allocation5]
    $region21: #{tpu_custom_call.1} parent=1 // pred_fallthru
      _
    // Predicated region
    $region22: #{tpu_custom_call.1} parent=1 // pred_check
      _
    $region23: #{tpu_custom_call.1} parent=1 // pred_check_branch
      %34 = sbr.rel (0) target = $region25
    $region24: #{tpu_custom_call.1} parent=1 // pred_region
      %s36 = ssub.s32 2048, 2048
      %37 = vsyncadd [#allocation3], %s36
      %s38 = sshll.u32 [#allocation6], 4
      %s39 = int_to_ptr.vmem [resolvable:$true] %s38
      %44 = dma.hbm_to_vmem [thread:$0]  %s5, 2048, %s39, [#allocation3], 128, 128, 8
    $region25: #{tpu_custom_call.1} parent=1 // pred_fallthru
      _
    // Predicated region
    $region26: #{tpu_custom_call.1} parent=1 // pred_check
      _
    $region27: #{tpu_custom_call.1} parent=1 // pred_check_branch
      %46 = sbr.rel (0) target = $region29
    $region28: #{tpu_custom_call.1} parent=1 // pred_region
      _
    $region29: #{tpu_custom_call.1} parent=1 // pred_fallthru
      _
    // Predicated region
    $region30: #{tpu_custom_call.1} parent=1 // pred_check
      _
    $region31: #{tpu_custom_call.1} parent=1 // pred_check_branch
      %48 = sbr.rel (0) target = $region33
    $region32: #{tpu_custom_call.1} parent=1 // pred_region
      %49 = dma.done [#allocation5], 64
    $region33: #{tpu_custom_call.1} parent=1 // pred_fallthru
      _
    // Predicated region
    $region34: #{tpu_custom_call.1} parent=1 // pred_check
      _
    $region35: #{tpu_custom_call.1} parent=1 // pred_check_branch
      %51 = sbr.rel (0) target = $region37
    $region36: #{tpu_custom_call.1} parent=1 // pred_region
      %52 = dma.done [#allocation3], 2048
    $region37: #{tpu_custom_call.1} parent=1 // pred_fallthru
      _
    %53 = sfence
    %v54 = vld [vmem:[%s0] sm:$0xff]
    %v55 = vld [vmem:[%s0 + $0x8] sm:$0xff]
    %v56 = vld [vmem:[%s1] sm:$0xff]
    %vm57 = vcmask 64512
    %v59 = vsel %vm57, %v54, 0
    %v62 = vsel %vm57, %v55, 0
    %64 = vmatprep.subr.mxu0 0.0
    %65 = vmatpush1.msra.mxu0 %v56
    %66 = vmatprep.subr.mxu0 0.0
    %67 = vmatpush1.msra.mxu0 0.0
    %68 = vmatprep.subr.mxu0 0.0
    %69 = vmatpush1.msra.mxu0 0.0
    %70 = vmatprep.subr.mxu0 0.0
    %71 = vmatpush1.msra.mxu0 0.0
    %72 = vmatprep.subr.mxu0 0.0
    %73 = vmatpush1.msra.mxu0 0.0
    %74 = vmatprep.subr.mxu0 0.0
    %75 = vmatpush1.msra.mxu0 0.0
    %76 = vmatprep.subr.mxu0 0.0
    %77 = vmatpush1.msra.mxu0 0.0
    %78 = vmatprep.subr.mxu0 0.0
    %79 = vmatpush1.msra.mxu0 0.0
    %80 = vmatprep.subr.mxu0 0.0
    %81 = vmatpush1.msra.mxu0 0.0
    %82 = vmatprep.subr.mxu0 0.0
    %83 = vmatpush1.msra.mxu0 0.0
    %84 = vmatprep.subr.mxu0 0.0
    %85 = vmatpush1.msra.mxu0 0.0
    %86 = vmatprep.subr.mxu0 0.0
    %87 = vmatpush1.msra.mxu0 0.0
    %88 = vmatprep.subr.mxu0 0.0
    %89 = vmatpush1.msra.mxu0 0.0
    %90 = vmatprep.subr.mxu0 0.0
    %91 = vmatpush1.msra.mxu0 0.0
    %92 = vmatprep.subr.mxu0 0.0
    %93 = vmatpush1.msra.mxu0 0.0
    %94 = vmatprep.subr.mxu0 0.0
    %95 = vmatpush1.msra.mxu0 0.0
    %96 = vmatprep.subr.mxu0 0.0
    %97 = vmatpush1.msra.mxu0 0.0
    %98 = vmatprep.subr.mxu0 0.0
    %99 = vmatpush1.msra.mxu0 0.0
    %100 = vmatprep.subr.mxu0 0.0
    %101 = vmatpush1.msra.mxu0 0.0
    %102 = vmatprep.subr.mxu0 0.0
    %103 = vmatpush1.msra.mxu0 0.0
    %104 = vmatprep.subr.mxu0 0.0
    %105 = vmatpush1.msra.mxu0 0.0
    %106 = vmatprep.subr.mxu0 0.0
    %107 = vmatpush1.msra.mxu0 0.0
    %108 = vmatprep.subr.mxu0 0.0
    %109 = vmatpush1.msra.mxu0 0.0
    %110 = vmatprep.subr.mxu0 0.0
    %111 = vmatpush1.msra.mxu0 0.0
    %112 = vmatprep.subr.mxu0 0.0
    %113 = vmatpush1.msra.mxu0 0.0
    %114 = vmatprep.subr.mxu0 0.0
    %115 = vmatpush1.msra.mxu0 0.0
    %116 = vmatprep.subr.mxu0 0.0
    %117 = vmatpush1.msra.mxu0 0.0
    %118 = vmatprep.subr.mxu0 0.0
    %119 = vmatpush1.msra.mxu0 0.0
    %120 = vmatprep.subr.mxu0 0.0
    %121 = vmatpush1.msra.mxu0 0.0
    %122 = vmatprep.subr.mxu0 0.0
    %123 = vmatpush1.msra.mxu0 0.0
    %124 = vmatprep.subr.mxu0 0.0
    %125 = vmatpush1.msra.mxu0 0.0
    %126 = vmatprep.subr.mxu0 0.0
    %127 = vmatpush1.msra.mxu0 0.0
    %128 = vmatprep.mubr.f32.mxu0 0.0
    %129 = vmatmul.mubr.f32.gmra.mrb[0].mxu0 %v59
    %v130 = vpop.f32.mrb[0].mxu0
    %v131 = vadd.f32 0.0, %v130
    %v132 = vpop.f32.mrb[0].mxu0
    %133 = vmatprep.mubr.f32.mxu0 0.0
    %134 = vmatmul.mubr.f32.gmra.mrb[0].mxu0 %v62
    %v135 = vpop.f32.mrb[0].mxu0
    %v136 = vadd.f32 0.0, %v135
    %v137 = vpop.f32.mrb[0].mxu0
    %138 = vdwg.mxu0
    %v139 = vld [vmem:[%s2] sm:$0xf]
    %v140 = vld [vmem:[%s3] sm:$0xf]
    %v141 = vld [vmem:[%s6] sm:$0xff]
    %v142 = vld [vmem:[%s6 + $0x8] sm:$0xff]
    %vm143 = vcmp.gt.f32.partialorder %v141, 0.0
    %vm144 = vcmp.gt.f32.partialorder %v142, 0.0
    %v145 = vlaneseq
    %v146 = vand.u32 %v145, 127
    %v147 = vlaneseq
    %v148 = vshrl.u32 %v147, 7
    %v149 = vsub.s32 0, %v148
    %v150 = vrot.slane %v140, %v149
    %v151 = vmul.f32 %v131, %v150
    %v152 = vmul.f32 %v136, %v150
    %vm153 = vcmask 261120
    %v154 = vsel %vm153, %v151, 0.0
    %155 = vadd.xlane.f32.xlu0 %v154
    %v156 = vpop.xlane.xlu0 %155
    %v157 = vsel %vm153, %v152, 0.0
    %158 = vadd.xlane.f32.xlu0 %v157
    %v159 = vpop.xlane.xlu0 %158
    %v161 = vsel %vm153, %v139, 0
    %v164 = vsel %vm153, %v131, 0
    %v167 = vsel %vm153, %v136, 0
    %169 = vmatprep.subr.mxu0 0.0
    %170 = vmatpush1.xpose.msra.mxu0 %v164
    %171 = vmatprep.subr.mxu0 0.0
    %172 = vmatpush1.xpose.msra.mxu0 %v167
    %173 = vmatprep.subr.mxu0 0.0
    %174 = vmatpush1.xpose.msra.mxu0 0.0
    %175 = vmatprep.subr.mxu0 0.0
    %176 = vmatpush1.xpose.msra.mxu0 0.0
    %177 = vmatprep.subr.mxu0 0.0
    %178 = vmatpush1.xpose.msra.mxu0 0.0
    %179 = vmatprep.subr.mxu0 0.0
    %180 = vmatpush1.xpose.msra.mxu0 0.0
    %181 = vmatprep.subr.mxu0 0.0
    %182 = vmatpush1.xpose.msra.mxu0 0.0
    %183 = vmatprep.subr.mxu0 0.0
    %184 = vmatpush1.xpose.msra.mxu0 0.0
    %185 = vmatprep.subr.mxu0 0.0
    %186 = vmatpush1.xpose.msra.mxu0 0.0
    %187 = vmatprep.subr.mxu0 0.0
    %188 = vmatpush1.xpose.msra.mxu0 0.0
    %189 = vmatprep.subr.mxu0 0.0
    %190 = vmatpush1.xpose.msra.mxu0 0.0
    %191 = vmatprep.subr.mxu0 0.0
    %192 = vmatpush1.xpose.msra.mxu0 0.0
    %193 = vmatprep.subr.mxu0 0.0
    %194 = vmatpush1.xpose.msra.mxu0 0.0
    %195 = vmatprep.subr.mxu0 0.0
    %196 = vmatpush1.xpose.msra.mxu0 0.0
    %197 = vmatprep.subr.mxu0 0.0
    %198 = vmatpush1.xpose.msra.mxu0 0.0
    %199 = vmatprep.subr.mxu0 0.0
    %200 = vmatpush1.xpose.msra.mxu0 0.0
    %201 = vmatprep.subr.mxu0 0.0
    %202 = vmatpush1.xpose.msra.mxu0 0.0
    %203 = vmatprep.subr.mxu0 0.0
    %204 = vmatpush1.xpose.msra.mxu0 0.0
    %205 = vmatprep.subr.mxu0 0.0
    %206 = vmatpush1.xpose.msra.mxu0 0.0
    %207 = vmatprep.subr.mxu0 0.0
    %208 = vmatpush1.xpose.msra.mxu0 0.0
    %209 = vmatprep.subr.mxu0 0.0
    %210 = vmatpush1.xpose.msra.mxu0 0.0
    %211 = vmatprep.subr.mxu0 0.0
    %212 = vmatpush1.xpose.msra.mxu0 0.0
    %213 = vmatprep.subr.mxu0 0.0
    %214 = vmatpush1.xpose.msra.mxu0 0.0
    %215 = vmatprep.subr.mxu0 0.0
    %216 = vmatpush1.xpose.msra.mxu0 0.0
    %217 = vmatprep.subr.mxu0 0.0
    %218 = vmatpush1.xpose.msra.mxu0 0.0
    %219 = vmatprep.subr.mxu0 0.0
    %220 = vmatpush1.xpose.msra.mxu0 0.0
    %221 = vmatprep.subr.mxu0 0.0
    %222 = vmatpush1.xpose.msra.mxu0 0.0
    %223 = vmatprep.subr.mxu0 0.0
    %224 = vmatpush1.xpose.msra.mxu0 0.0
    %225 = vmatprep.subr.mxu0 0.0
    %226 = vmatpush1.xpose.msra.mxu0 0.0
    %227 = vmatprep.subr.mxu0 0.0
    %228 = vmatpush1.xpose.msra.mxu0 0.0
    %229 = vmatprep.subr.mxu0 0.0
    %230 = vmatpush1.xpose.msra.mxu0 0.0
    %231 = vmatprep.subr.mxu0 0.0
    %232 = vmatpush1.xpose.msra.mxu0 0.0
    %233 = vmatprep.mubr.f32.mxu0 0.0
    %234 = vmatmul.mubr.f32.gmra.mrb[0].mxu0 %v161
    %v235 = vpop.f32.mrb[0].mxu0
    %v236 = vadd.f32 0.0, %v235
    %v237 = vpop.f32.mrb[0].mxu0
    %238 = vdwg.mxu0
    %v239 = vlaneseq
    %v240 = vshrl.u32 %v239, 7
    %v241 = vsub.s32 0, %v240
    %v242 = vrot.slane %v236, %v241
    %v243 = vadd.f32 %v156, %v242
    %v244 = vadd.f32 %v159, %v242
    %s245 = sld [smem:[#allocation2]]
    %v246 = vld [vmem:[#allocation6] sm:$0xff]
    %v247 = vld [vmem:[#allocation6 + $0x8] sm:$0xff]
    %v248 = vstv %s245
    %v249 = vmul.f32 %v248, %v246
    %v250 = vmul.f32 %v248, %v247
    %v251 = vadd.f32 %v243, %v249
    %v252 = vadd.f32 %v244, %v250
    %s253 = sld [smem:[#allocation2 + $0x1]]
    %s254 = scalar_lea.vmem [#allocation6], 16
    %v255 = vld [vmem:[%s254] sm:$0xff]
    %v256 = vld [vmem:[%s254 + $0x8] sm:$0xff]
    %v257 = vstv %s253
    %v258 = vmul.f32 %v257, %v255
    %v259 = vmul.f32 %v257, %v256
    %v260 = vadd.f32 %v251, %v258
    %v261 = vadd.f32 %v252, %v259
    %vm262 = vcmp.ge.f32.partialorder %v260, 0.0
    %vm263 = vcmp.ge.f32.partialorder %v261, 0.0
    %v264 = vmul.f32 %v260, 0.2
    %v265 = vmul.f32 %v261, 0.2
    %v266 = vsel %vm262, %v260, %v264
    %v267 = vsel %vm263, %v261, %v265
    %v268 = vsel %vm143, %v266, -1e+30
    %v269 = vsel %vm144, %v267, -1e+30
    %vm270 = vcmask 130048
    %v271 = vsel %vm270, %v268, -inf
    %272 = vmax.xlane.f32.xlu0 %v271
    %v273 = vpop.xlane.xlu0 %272
    %v274 = vsel %vm270, %v269, -inf
    %275 = vmax.xlane.f32.xlu0 %v274
    %v276 = vpop.xlane.xlu0 %275
    %v277 = vsub.f32 %v268, %v273
    %v278 = vsub.f32 %v269, %v276
    %v279 = vmul.f32 %v277, 1.442695
    %v280 = vpow.pop %v279
    %v281 = vmul.f32 %v278, 1.442695
    %v282 = vpow.pop %v281
    %v283 = vsel %vm270, %v280, 0.0
    %284 = vadd.xlane.f32.xlu0 %v283
    %v285 = vpop.xlane.xlu0 %284
    %v286 = vsel %vm270, %v282, 0.0
    %287 = vadd.xlane.f32.xlu0 %v286
    %v288 = vpop.xlane.xlu0 %287
    %v289 = vrcp.pop %v285
    %v290 = vmul.f32 %v280, %v289
    %v291 = vrcp.pop %v288
    %v292 = vmul.f32 %v282, %v291
    %vm293 = vcmp.ge.s32.totalorder %v146, 0
    %vm294 = vcmp.lt.s32.totalorder %v146, 8
    %vm295 = vmand %vm293, %vm294
    %v296 = vsel %vm295, 1, 0
    %vm297 = vcmp.eq.s32.totalorder %v296, 1
    %v298 = vsel %vm297, %v131, 0.0
    %v299 = vsel %vm297, %v136, 0.0
    %v300 = vlaneseq
    %v301 = vshrl.u32 %v300, 7
    %v302 = vsub.s32 1, %v301
    %v303 = vrot.slane %v140, %v302
    %v304 = vmul.f32 %v131, %v303
    %v305 = vmul.f32 %v136, %v303
    %v306 = vsel %vm153, %v304, 0.0
    %307 = vadd.xlane.f32.xlu0 %v306
    %v308 = vpop.xlane.xlu0 %307
    %v309 = vsel %vm153, %v305, 0.0
    %310 = vadd.xlane.f32.xlu0 %v309
    %v311 = vpop.xlane.xlu0 %310
    %v312 = vrot.slane %v139, 1
    %v313 = vsel %vm153, %v312, 0
    %315 = vmatprep.subr.mxu0 0.0
    %316 = vmatpush1.xpose.msra.mxu0 %v164
    %317 = vmatprep.subr.mxu0 0.0
    %318 = vmatpush1.xpose.msra.mxu0 %v167
    %319 = vmatprep.subr.mxu0 0.0
    %320 = vmatpush1.xpose.msra.mxu0 0.0
    %321 = vmatprep.subr.mxu0 0.0
    %322 = vmatpush1.xpose.msra.mxu0 0.0
    %323 = vmatprep.subr.mxu0 0.0
    %324 = vmatpush1.xpose.msra.mxu0 0.0
    %325 = vmatprep.subr.mxu0 0.0
    %326 = vmatpush1.xpose.msra.mxu0 0.0
    %327 = vmatprep.subr.mxu0 0.0
    %328 = vmatpush1.xpose.msra.mxu0 0.0
    %329 = vmatprep.subr.mxu0 0.0
    %330 = vmatpush1.xpose.msra.mxu0 0.0
    %331 = vmatprep.subr.mxu0 0.0
    %332 = vmatpush1.xpose.msra.mxu0 0.0
    %333 = vmatprep.subr.mxu0 0.0
    %334 = vmatpush1.xpose.msra.mxu0 0.0
    %335 = vmatprep.subr.mxu0 0.0
    %336 = vmatpush1.xpose.msra.mxu0 0.0
    %337 = vmatprep.subr.mxu0 0.0
    %338 = vmatpush1.xpose.msra.mxu0 0.0
    %339 = vmatprep.subr.mxu0 0.0
    %340 = vmatpush1.xpose.msra.mxu0 0.0
    %341 = vmatprep.subr.mxu0 0.0
    %342 = vmatpush1.xpose.msra.mxu0 0.0
    %343 = vmatprep.subr.mxu0 0.0
    %344 = vmatpush1.xpose.msra.mxu0 0.0
    %345 = vmatprep.subr.mxu0 0.0
    %346 = vmatpush1.xpose.msra.mxu0 0.0
    %347 = vmatprep.subr.mxu0 0.0
    %348 = vmatpush1.xpose.msra.mxu0 0.0
    %349 = vmatprep.subr.mxu0 0.0
    %350 = vmatpush1.xpose.msra.mxu0 0.0
    %351 = vmatprep.subr.mxu0 0.0
    %352 = vmatpush1.xpose.msra.mxu0 0.0
    %353 = vmatprep.subr.mxu0 0.0
    %354 = vmatpush1.xpose.msra.mxu0 0.0
    %355 = vmatprep.subr.mxu0 0.0
    %356 = vmatpush1.xpose.msra.mxu0 0.0
    %357 = vmatprep.subr.mxu0 0.0
    %358 = vmatpush1.xpose.msra.mxu0 0.0
    %359 = vmatprep.subr.mxu0 0.0
    %360 = vmatpush1.xpose.msra.mxu0 0.0
    %361 = vmatprep.subr.mxu0 0.0
    %362 = vmatpush1.xpose.msra.mxu0 0.0
    %363 = vmatprep.subr.mxu0 0.0
    %364 = vmatpush1.xpose.msra.mxu0 0.0
    %365 = vmatprep.subr.mxu0 0.0
    %366 = vmatpush1.xpose.msra.mxu0 0.0
    %367 = vmatprep.subr.mxu0 0.0
    %368 = vmatpush1.xpose.msra.mxu0 0.0
    %369 = vmatprep.subr.mxu0 0.0
    %370 = vmatpush1.xpose.msra.mxu0 0.0
    %371 = vmatprep.subr.mxu0 0.0
    %372 = vmatpush1.xpose.msra.mxu0 0.0
    %373 = vmatprep.subr.mxu0 0.0
    %374 = vmatpush1.xpose.msra.mxu0 0.0
    %375 = vmatprep.subr.mxu0 0.0
    %376 = vmatpush1.xpose.msra.mxu0 0.0
    %377 = vmatprep.subr.mxu0 0.0
    %378 = vmatpush1.xpose.msra.mxu0 0.0
    %379 = vmatprep.mubr.f32.mxu0 0.0
    %380 = vmatmul.mubr.f32.gmra.mrb[0].mxu0 %v313
    %v381 = vpop.f32.mrb[0].mxu0
    %v382 = vadd.f32 0.0, %v381
    %v383 = vpop.f32.mrb[0].mxu0
    %384 = vdwg.mxu0
    %v385 = vlaneseq
    %v386 = vshrl.u32 %v385, 7
    %v387 = vsub.s32 0, %v386
    %v388 = vrot.slane %v382, %v387
    %v389 = vadd.f32 %v308, %v388
    %v390 = vadd.f32 %v311, %v388
    %s391 = sld [smem:[#allocation2 + $0x80]]
    %s392 = scalar_lea.vmem [#allocation6], 32
    %v393 = vld [vmem:[%s392] sm:$0xff]
    %v394 = vld [vmem:[%s392 + $0x8] sm:$0xff]
    %v395 = vstv %s391
    %v396 = vmul.f32 %v395, %v393
    %v397 = vmul.f32 %v395, %v394
    %v398 = vadd.f32 %v389, %v396
    %v399 = vadd.f32 %v390, %v397
    %s400 = sld [smem:[#allocation2 + $0x81]]
    %s401 = scalar_lea.vmem [#allocation6], 48
    %v402 = vld [vmem:[%s401] sm:$0xff]
    %v403 = vld [vmem:[%s401 + $0x8] sm:$0xff]
    %v404 = vstv %s400
    %v405 = vmul.f32 %v404, %v402
    %v406 = vmul.f32 %v404, %v403
    %v407 = vadd.f32 %v398, %v405
    %v408 = vadd.f32 %v399, %v406
    %vm409 = vcmp.ge.f32.partialorder %v407, 0.0
    %vm410 = vcmp.ge.f32.partialorder %v408, 0.0
    %v411 = vmul.f32 %v407, 0.2
    %v412 = vmul.f32 %v408, 0.2
    %v413 = vsel %vm409, %v407, %v411
    %v414 = vsel %vm410, %v408, %v412
    %v415 = vsel %vm143, %v413, -1e+30
    %v416 = vsel %vm144, %v414, -1e+30
    %v417 = vsel %vm270, %v415, -inf
    %418 = vmax.xlane.f32.xlu0 %v417
    %v419 = vpop.xlane.xlu0 %418
    %v420 = vsel %vm270, %v416, -inf
    %421 = vmax.xlane.f32.xlu0 %v420
    %v422 = vpop.xlane.xlu0 %421
    %v423 = vsub.f32 %v415, %v419
    %v424 = vsub.f32 %v416, %v422
    %v425 = vmul.f32 %v423, 1.442695
    %v426 = vpow.pop %v425
    %v427 = vmul.f32 %v424, 1.442695
    %v428 = vpow.pop %v427
    %v429 = vsel %vm270, %v426, 0.0
    %430 = vadd.xlane.f32.xlu0 %v429
    %v431 = vpop.xlane.xlu0 %430
    %v432 = vsel %vm270, %v428, 0.0
    %433 = vadd.xlane.f32.xlu0 %v432
    %v434 = vpop.xlane.xlu0 %433
    %v435 = vrcp.pop %v431
    %v436 = vmul.f32 %v426, %v435
    %v437 = vrcp.pop %v434
    %v438 = vmul.f32 %v428, %v437
    %vm439 = vcmp.ge.s32.totalorder %v146, 8
    %vm440 = vcmp.lt.s32.totalorder %v146, 16
    %vm441 = vmand %vm439, %vm440
    %v442 = vsel %vm441, 1, 0
    %vm443 = vcmp.eq.s32.totalorder %v442, 1
    %v444 = vsel %vm443, %v131, 0.0
    %v445 = vsel %vm443, %v136, 0.0
    %v447 = vsel %vm270, %v436, 0
    %v450 = vsel %vm270, %v438, 0
    %452 = vmatprep.subr.mxu0 0.0
    %453 = vmatpush1.msra.mxu0 %v444
    %454 = vmatprep.subr.mxu0 0.0
    %455 = vmatpush1.msra.mxu0 %v445
    %456 = vmatprep.subr.mxu0 0.0
    %457 = vmatpush1.msra.mxu0 0.0
    %458 = vmatprep.subr.mxu0 0.0
    %459 = vmatpush1.msra.mxu0 0.0
    %460 = vmatprep.subr.mxu0 0.0
    %461 = vmatpush1.msra.mxu0 0.0
    %462 = vmatprep.subr.mxu0 0.0
    %463 = vmatpush1.msra.mxu0 0.0
    %464 = vmatprep.subr.mxu0 0.0
    %465 = vmatpush1.msra.mxu0 0.0
    %466 = vmatprep.subr.mxu0 0.0
    %467 = vmatpush1.msra.mxu0 0.0
    %468 = vmatprep.subr.mxu0 0.0
    %469 = vmatpush1.msra.mxu0 0.0
    %470 = vmatprep.subr.mxu0 0.0
    %471 = vmatpush1.msra.mxu0 0.0
    %472 = vmatprep.subr.mxu0 0.0
    %473 = vmatpush1.msra.mxu0 0.0
    %474 = vmatprep.subr.mxu0 0.0
    %475 = vmatpush1.msra.mxu0 0.0
    %476 = vmatprep.subr.mxu0 0.0
    %477 = vmatpush1.msra.mxu0 0.0
    %478 = vmatprep.subr.mxu0 0.0
    %479 = vmatpush1.msra.mxu0 0.0
    %480 = vmatprep.subr.mxu0 0.0
    %481 = vmatpush1.msra.mxu0 0.0
    %482 = vmatprep.subr.mxu0 0.0
    %483 = vmatpush1.msra.mxu0 0.0
    %484 = vmatprep.subr.mxu0 0.0
    %485 = vmatpush1.msra.mxu0 0.0
    %486 = vmatprep.subr.mxu0 0.0
    %487 = vmatpush1.msra.mxu0 0.0
    %488 = vmatprep.subr.mxu0 0.0
    %489 = vmatpush1.msra.mxu0 0.0
    %490 = vmatprep.subr.mxu0 0.0
    %491 = vmatpush1.msra.mxu0 0.0
    %492 = vmatprep.subr.mxu0 0.0
    %493 = vmatpush1.msra.mxu0 0.0
    %494 = vmatprep.subr.mxu0 0.0
    %495 = vmatpush1.msra.mxu0 0.0
    %496 = vmatprep.subr.mxu0 0.0
    %497 = vmatpush1.msra.mxu0 0.0
    %498 = vmatprep.subr.mxu0 0.0
    %499 = vmatpush1.msra.mxu0 0.0
    %500 = vmatprep.subr.mxu0 0.0
    %501 = vmatpush1.msra.mxu0 0.0
    %502 = vmatprep.subr.mxu0 0.0
    %503 = vmatpush1.msra.mxu0 0.0
    %504 = vmatprep.subr.mxu0 0.0
    %505 = vmatpush1.msra.mxu0 0.0
    %506 = vmatprep.subr.mxu0 0.0
    %507 = vmatpush1.msra.mxu0 0.0
    %508 = vmatprep.subr.mxu0 0.0
    %509 = vmatpush1.msra.mxu0 0.0
    %510 = vmatprep.subr.mxu0 0.0
    %511 = vmatpush1.msra.mxu0 0.0
    %512 = vmatprep.subr.mxu0 0.0
    %513 = vmatpush1.msra.mxu0 0.0
    %514 = vmatprep.subr.mxu0 0.0
    %515 = vmatpush1.msra.mxu0 0.0
    %516 = vmatprep.mubr.f32.mxu0 0.0
    %517 = vmatmul.mubr.f32.gmra.mrb[0].mxu0 %v447
    %v518 = vpop.f32.mrb[0].mxu0
    %v519 = vadd.f32 0.0, %v518
    %v520 = vpop.f32.mrb[0].mxu0
    %521 = vmatprep.mubr.f32.mxu0 0.0
    %522 = vmatmul.mubr.f32.gmra.mrb[0].mxu0 %v450
    %v523 = vpop.f32.mrb[0].mxu0
    %v524 = vadd.f32 0.0, %v523
    %v525 = vpop.f32.mrb[0].mxu0
    %526 = vdwg.mxu0
    %v528 = vsel %vm270, %v290, 0
    %v531 = vsel %vm270, %v292, 0
    %533 = vmatprep.subr.mxu0 0.0
    %534 = vmatpush1.msra.mxu0 %v298
    %535 = vmatprep.subr.mxu0 0.0
    %536 = vmatpush1.msra.mxu0 %v299
    %537 = vmatprep.subr.mxu0 0.0
    %538 = vmatpush1.msra.mxu0 0.0
    %539 = vmatprep.subr.mxu0 0.0
    %540 = vmatpush1.msra.mxu0 0.0
    %541 = vmatprep.subr.mxu0 0.0
    %542 = vmatpush1.msra.mxu0 0.0
    %543 = vmatprep.subr.mxu0 0.0
    %544 = vmatpush1.msra.mxu0 0.0
    %545 = vmatprep.subr.mxu0 0.0
    %546 = vmatpush1.msra.mxu0 0.0
    %547 = vmatprep.subr.mxu0 0.0
    %548 = vmatpush1.msra.mxu0 0.0
    %549 = vmatprep.subr.mxu0 0.0
    %550 = vmatpush1.msra.mxu0 0.0
    %551 = vmatprep.subr.mxu0 0.0
    %552 = vmatpush1.msra.mxu0 0.0
    %553 = vmatprep.subr.mxu0 0.0
    %554 = vmatpush1.msra.mxu0 0.0
    %555 = vmatprep.subr.mxu0 0.0
    %556 = vmatpush1.msra.mxu0 0.0
    %557 = vmatprep.subr.mxu0 0.0
    %558 = vmatpush1.msra.mxu0 0.0
    %559 = vmatprep.subr.mxu0 0.0
    %560 = vmatpush1.msra.mxu0 0.0
    %561 = vmatprep.subr.mxu0 0.0
    %562 = vmatpush1.msra.mxu0 0.0
    %563 = vmatprep.subr.mxu0 0.0
    %564 = vmatpush1.msra.mxu0 0.0
    %565 = vmatprep.subr.mxu0 0.0
    %566 = vmatpush1.msra.mxu0 0.0
    %567 = vmatprep.subr.mxu0 0.0
    %568 = vmatpush1.msra.mxu0 0.0
    %569 = vmatprep.subr.mxu0 0.0
    %570 = vmatpush1.msra.mxu0 0.0
    %571 = vmatprep.subr.mxu0 0.0
    %572 = vmatpush1.msra.mxu0 0.0
    %573 = vmatprep.subr.mxu0 0.0
    %574 = vmatpush1.msra.mxu0 0.0
    %575 = vmatprep.subr.mxu0 0.0
    %576 = vmatpush1.msra.mxu0 0.0
    %577 = vmatprep.subr.mxu0 0.0
    %578 = vmatpush1.msra.mxu0 0.0
    %579 = vmatprep.subr.mxu0 0.0
    %580 = vmatpush1.msra.mxu0 0.0
    %581 = vmatprep.subr.mxu0 0.0
    %582 = vmatpush1.msra.mxu0 0.0
    %583 = vmatprep.subr.mxu0 0.0
    %584 = vmatpush1.msra.mxu0 0.0
    %585 = vmatprep.subr.mxu0 0.0
    %586 = vmatpush1.msra.mxu0 0.0
    %587 = vmatprep.subr.mxu0 0.0
    %588 = vmatpush1.msra.mxu0 0.0
    %589 = vmatprep.subr.mxu0 0.0
    %590 = vmatpush1.msra.mxu0 0.0
    %591 = vmatprep.subr.mxu0 0.0
    %592 = vmatpush1.msra.mxu0 0.0
    %593 = vmatprep.subr.mxu0 0.0
    %594 = vmatpush1.msra.mxu0 0.0
    %595 = vmatprep.subr.mxu0 0.0
    %596 = vmatpush1.msra.mxu0 0.0
    %597 = vmatprep.mubr.f32.mxu0 0.0
    %598 = vmatmul.mubr.f32.gmra.mrb[0].mxu0 %v528
    %v599 = vpop.f32.mrb[0].mxu0
    %v600 = vadd.f32 %v519, %v599
    %v601 = vpop.f32.mrb[0].mxu0
    %602 = vmatprep.mubr.f32.mxu0 0.0
    %603 = vmatmul.mubr.f32.gmra.mrb[0].mxu0 %v531
    %v604 = vpop.f32.mrb[0].mxu0
    %v605 = vadd.f32 %v524, %v604
    %v606 = vpop.f32.mrb[0].mxu0
    %607 = vdwg.mxu0
    %v608 = vlaneseq
    %v609 = vshrl.u32 %v608, 7
    %v610 = vsub.s32 2, %v609
    %v611 = vrot.slane %v140, %v610
    %v612 = vmul.f32 %v131, %v611
    %v613 = vmul.f32 %v136, %v611
    %v614 = vsel %vm153, %v612, 0.0
    %615 = vadd.xlane.f32.xlu0 %v614
    %v616 = vpop.xlane.xlu0 %615
    %v617 = vsel %vm153, %v613, 0.0
    %618 = vadd.xlane.f32.xlu0 %v617
    %v619 = vpop.xlane.xlu0 %618
    %v620 = vrot.slane %v139, 2
    %v621 = vsel %vm153, %v620, 0
    %623 = vmatprep.subr.mxu0 0.0
    %624 = vmatpush1.xpose.msra.mxu0 %v164
    %625 = vmatprep.subr.mxu0 0.0
    %626 = vmatpush1.xpose.msra.mxu0 %v167
    %627 = vmatprep.subr.mxu0 0.0
    %628 = vmatpush1.xpose.msra.mxu0 0.0
    %629 = vmatprep.subr.mxu0 0.0
    %630 = vmatpush1.xpose.msra.mxu0 0.0
    %631 = vmatprep.subr.mxu0 0.0
    %632 = vmatpush1.xpose.msra.mxu0 0.0
    %633 = vmatprep.subr.mxu0 0.0
    %634 = vmatpush1.xpose.msra.mxu0 0.0
    %635 = vmatprep.subr.mxu0 0.0
    %636 = vmatpush1.xpose.msra.mxu0 0.0
    %637 = vmatprep.subr.mxu0 0.0
    %638 = vmatpush1.xpose.msra.mxu0 0.0
    %639 = vmatprep.subr.mxu0 0.0
    %640 = vmatpush1.xpose.msra.mxu0 0.0
    %641 = vmatprep.subr.mxu0 0.0
    %642 = vmatpush1.xpose.msra.mxu0 0.0
    %643 = vmatprep.subr.mxu0 0.0
    %644 = vmatpush1.xpose.msra.mxu0 0.0
    %645 = vmatprep.subr.mxu0 0.0
    %646 = vmatpush1.xpose.msra.mxu0 0.0
    %647 = vmatprep.subr.mxu0 0.0
    %648 = vmatpush1.xpose.msra.mxu0 0.0
    %649 = vmatprep.subr.mxu0 0.0
    %650 = vmatpush1.xpose.msra.mxu0 0.0
    %651 = vmatprep.subr.mxu0 0.0
    %652 = vmatpush1.xpose.msra.mxu0 0.0
    %653 = vmatprep.subr.mxu0 0.0
    %654 = vmatpush1.xpose.msra.mxu0 0.0
    %655 = vmatprep.subr.mxu0 0.0
    %656 = vmatpush1.xpose.msra.mxu0 0.0
    %657 = vmatprep.subr.mxu0 0.0
    %658 = vmatpush1.xpose.msra.mxu0 0.0
    %659 = vmatprep.subr.mxu0 0.0
    %660 = vmatpush1.xpose.msra.mxu0 0.0
    %661 = vmatprep.subr.mxu0 0.0
    %662 = vmatpush1.xpose.msra.mxu0 0.0
    %663 = vmatprep.subr.mxu0 0.0
    %664 = vmatpush1.xpose.msra.mxu0 0.0
    %665 = vmatprep.subr.mxu0 0.0
    %666 = vmatpush1.xpose.msra.mxu0 0.0
    %667 = vmatprep.subr.mxu0 0.0
    %668 = vmatpush1.xpose.msra.mxu0 0.0
    %669 = vmatprep.subr.mxu0 0.0
    %670 = vmatpush1.xpose.msra.mxu0 0.0
    %671 = vmatprep.subr.mxu0 0.0
    %672 = vmatpush1.xpose.msra.mxu0 0.0
    %673 = vmatprep.subr.mxu0 0.0
    %674 = vmatpush1.xpose.msra.mxu0 0.0
    %675 = vmatprep.subr.mxu0 0.0
    %676 = vmatpush1.xpose.msra.mxu0 0.0
    %677 = vmatprep.subr.mxu0 0.0
    %678 = vmatpush1.xpose.msra.mxu0 0.0
    %679 = vmatprep.subr.mxu0 0.0
    %680 = vmatpush1.xpose.msra.mxu0 0.0
    %681 = vmatprep.subr.mxu0 0.0
    %682 = vmatpush1.xpose.msra.mxu0 0.0
    %683 = vmatprep.subr.mxu0 0.0
    %684 = vmatpush1.xpose.msra.mxu0 0.0
    %685 = vmatprep.subr.mxu0 0.0
    %686 = vmatpush1.xpose.msra.mxu0 0.0
    %687 = vmatprep.mubr.f32.mxu0 0.0
    %688 = vmatmul.mubr.f32.gmra.mrb[0].mxu0 %v621
    %v689 = vpop.f32.mrb[0].mxu0
    %v690 = vadd.f32 0.0, %v689
    %v691 = vpop.f32.mrb[0].mxu0
    %692 = vdwg.mxu0
    %v693 = vlaneseq
    %v694 = vshrl.u32 %v693, 7
    %v695 = vsub.s32 0, %v694
    %v696 = vrot.slane %v690, %v695
    %v697 = vadd.f32 %v616, %v696
    %v698 = vadd.f32 %v619, %v696
    %s699 = sld [smem:[#allocation2 + $0x100]]
    %s700 = scalar_lea.vmem [#allocation6], 64
    %v701 = vld [vmem:[%s700] sm:$0xff]
    %v702 = vld [vmem:[%s700 + $0x8] sm:$0xff]
    %v703 = vstv %s699
    %v704 = vmul.f32 %v703, %v701
    %v705 = vmul.f32 %v703, %v702
    %v706 = vadd.f32 %v697, %v704
    %v707 = vadd.f32 %v698, %v705
    %s708 = sld [smem:[#allocation2 + $0x101]]
    %s709 = scalar_lea.vmem [#allocation6], 80
    %v710 = vld [vmem:[%s709] sm:$0xff]
    %v711 = vld [vmem:[%s709 + $0x8] sm:$0xff]
    %v712 = vstv %s708
    %v713 = vmul.f32 %v712, %v710
    %v714 = vmul.f32 %v712, %v711
    %v715 = vadd.f32 %v706, %v713
    %v716 = vadd.f32 %v707, %v714
    %vm717 = vcmp.ge.f32.partialorder %v715, 0.0
    %vm718 = vcmp.ge.f32.partialorder %v716, 0.0
    %v719 = vmul.f32 %v715, 0.2
    %v720 = vmul.f32 %v716, 0.2
    %v721 = vsel %vm717, %v715, %v719
    %v722 = vsel %vm718, %v716, %v720
    %v723 = vsel %vm143, %v721, -1e+30
    %v724 = vsel %vm144, %v722, -1e+30
    %v725 = vsel %vm270, %v723, -inf
    %726 = vmax.xlane.f32.xlu0 %v725
    %v727 = vpop.xlane.xlu0 %726
    %v728 = vsel %vm270, %v724, -inf
    %729 = vmax.xlane.f32.xlu0 %v728
    %v730 = vpop.xlane.xlu0 %729
    %v731 = vsub.f32 %v723, %v727
    %v732 = vsub.f32 %v724, %v730
    %v733 = vmul.f32 %v731, 1.442695
    %v734 = vpow.pop %v733
    %v735 = vmul.f32 %v732, 1.442695
    %v736 = vpow.pop %v735
    %v737 = vsel %vm270, %v734, 0.0
    %738 = vadd.xlane.f32.xlu0 %v737
    %v739 = vpop.xlane.xlu0 %738
    %v740 = vsel %vm270, %v736, 0.0
    %741 = vadd.xlane.f32.xlu0 %v740
    %v742 = vpop.xlane.xlu0 %741
    %v743 = vrcp.pop %v739
    %v744 = vmul.f32 %v734, %v743
    %v745 = vrcp.pop %v742
    %v746 = vmul.f32 %v736, %v745
    %vm747 = vcmp.ge.s32.totalorder %v146, 16
    %vm748 = vcmp.lt.s32.totalorder %v146, 24
    %vm749 = vmand %vm747, %vm748
    %v750 = vsel %vm749, 1, 0
    %vm751 = vcmp.eq.s32.totalorder %v750, 1
    %v752 = vsel %vm751, %v131, 0.0
    %v753 = vsel %vm751, %v136, 0.0
    %v755 = vsel %vm270, %v744, 0
    %v758 = vsel %vm270, %v746, 0
    %760 = vmatprep.subr.mxu0 0.0
    %761 = vmatpush1.msra.mxu0 %v752
    %762 = vmatprep.subr.mxu0 0.0
    %763 = vmatpush1.msra.mxu0 %v753
    %764 = vmatprep.subr.mxu0 0.0
    %765 = vmatpush1.msra.mxu0 0.0
    %766 = vmatprep.subr.mxu0 0.0
    %767 = vmatpush1.msra.mxu0 0.0
    %768 = vmatprep.subr.mxu0 0.0
    %769 = vmatpush1.msra.mxu0 0.0
    %770 = vmatprep.subr.mxu0 0.0
    %771 = vmatpush1.msra.mxu0 0.0
    %772 = vmatprep.subr.mxu0 0.0
    %773 = vmatpush1.msra.mxu0 0.0
    %774 = vmatprep.subr.mxu0 0.0
    %775 = vmatpush1.msra.mxu0 0.0
    %776 = vmatprep.subr.mxu0 0.0
    %777 = vmatpush1.msra.mxu0 0.0
    %778 = vmatprep.subr.mxu0 0.0
    %779 = vmatpush1.msra.mxu0 0.0
    %780 = vmatprep.subr.mxu0 0.0
    %781 = vmatpush1.msra.mxu0 0.0
    %782 = vmatprep.subr.mxu0 0.0
    %783 = vmatpush1.msra.mxu0 0.0
    %784 = vmatprep.subr.mxu0 0.0
    %785 = vmatpush1.msra.mxu0 0.0
    %786 = vmatprep.subr.mxu0 0.0
    %787 = vmatpush1.msra.mxu0 0.0
    %788 = vmatprep.subr.mxu0 0.0
    %789 = vmatpush1.msra.mxu0 0.0
    %790 = vmatprep.subr.mxu0 0.0
    %791 = vmatpush1.msra.mxu0 0.0
    %792 = vmatprep.subr.mxu0 0.0
    %793 = vmatpush1.msra.mxu0 0.0
    %794 = vmatprep.subr.mxu0 0.0
    %795 = vmatpush1.msra.mxu0 0.0
    %796 = vmatprep.subr.mxu0 0.0
    %797 = vmatpush1.msra.mxu0 0.0
    %798 = vmatprep.subr.mxu0 0.0
    %799 = vmatpush1.msra.mxu0 0.0
    %800 = vmatprep.subr.mxu0 0.0
    %801 = vmatpush1.msra.mxu0 0.0
    %802 = vmatprep.subr.mxu0 0.0
    %803 = vmatpush1.msra.mxu0 0.0
    %804 = vmatprep.subr.mxu0 0.0
    %805 = vmatpush1.msra.mxu0 0.0
    %806 = vmatprep.subr.mxu0 0.0
    %807 = vmatpush1.msra.mxu0 0.0
    %808 = vmatprep.subr.mxu0 0.0
    %809 = vmatpush1.msra.mxu0 0.0
    %810 = vmatprep.subr.mxu0 0.0
    %811 = vmatpush1.msra.mxu0 0.0
    %812 = vmatprep.subr.mxu0 0.0
    %813 = vmatpush1.msra.mxu0 0.0
    %814 = vmatprep.subr.mxu0 0.0
    %815 = vmatpush1.msra.mxu0 0.0
    %816 = vmatprep.subr.mxu0 0.0
    %817 = vmatpush1.msra.mxu0 0.0
    %818 = vmatprep.subr.mxu0 0.0
    %819 = vmatpush1.msra.mxu0 0.0
    %820 = vmatprep.subr.mxu0 0.0
    %821 = vmatpush1.msra.mxu0 0.0
    %822 = vmatprep.subr.mxu0 0.0
    %823 = vmatpush1.msra.mxu0 0.0
    %824 = vmatprep.mubr.f32.mxu0 0.0
    %825 = vmatmul.mubr.f32.gmra.mrb[0].mxu0 %v755
    %v826 = vpop.f32.mrb[0].mxu0
    %v827 = vadd.f32 0.0, %v826
    %v828 = vpop.f32.mrb[0].mxu0
    %829 = vmatprep.mubr.f32.mxu0 0.0
    %830 = vmatmul.mubr.f32.gmra.mrb[0].mxu0 %v758
    %v831 = vpop.f32.mrb[0].mxu0
    %v832 = vadd.f32 0.0, %v831
    %v833 = vpop.f32.mrb[0].mxu0
    %834 = vdwg.mxu0
    %v835 = vadd.f32 %v600, %v827
    %v836 = vadd.f32 %v605, %v832
    %v837 = vlaneseq
    %v838 = vshrl.u32 %v837, 7
    %v839 = vsub.s32 3, %v838
    %v840 = vrot.slane %v140, %v839
    %v841 = vmul.f32 %v131, %v840
    %v842 = vmul.f32 %v136, %v840
    %v843 = vsel %vm153, %v841, 0.0
    %844 = vadd.xlane.f32.xlu0 %v843
    %v845 = vpop.xlane.xlu0 %844
    %v846 = vsel %vm153, %v842, 0.0
    %847 = vadd.xlane.f32.xlu0 %v846
    %v848 = vpop.xlane.xlu0 %847
    %v849 = vrot.slane %v139, 3
    %v850 = vsel %vm153, %v849, 0
    %852 = vmatprep.subr.mxu0 0.0
    %853 = vmatpush1.xpose.msra.mxu0 %v164
    %854 = vmatprep.subr.mxu0 0.0
    %855 = vmatpush1.xpose.msra.mxu0 %v167
    %856 = vmatprep.subr.mxu0 0.0
    %857 = vmatpush1.xpose.msra.mxu0 0.0
    %858 = vmatprep.subr.mxu0 0.0
    %859 = vmatpush1.xpose.msra.mxu0 0.0
    %860 = vmatprep.subr.mxu0 0.0
    %861 = vmatpush1.xpose.msra.mxu0 0.0
    %862 = vmatprep.subr.mxu0 0.0
    %863 = vmatpush1.xpose.msra.mxu0 0.0
    %864 = vmatprep.subr.mxu0 0.0
    %865 = vmatpush1.xpose.msra.mxu0 0.0
    %866 = vmatprep.subr.mxu0 0.0
    %867 = vmatpush1.xpose.msra.mxu0 0.0
    %868 = vmatprep.subr.mxu0 0.0
    %869 = vmatpush1.xpose.msra.mxu0 0.0
    %870 = vmatprep.subr.mxu0 0.0
    %871 = vmatpush1.xpose.msra.mxu0 0.0
    %872 = vmatprep.subr.mxu0 0.0
    %873 = vmatpush1.xpose.msra.mxu0 0.0
    %874 = vmatprep.subr.mxu0 0.0
    %875 = vmatpush1.xpose.msra.mxu0 0.0
    %876 = vmatprep.subr.mxu0 0.0
    %877 = vmatpush1.xpose.msra.mxu0 0.0
    %878 = vmatprep.subr.mxu0 0.0
    %879 = vmatpush1.xpose.msra.mxu0 0.0
    %880 = vmatprep.subr.mxu0 0.0
    %881 = vmatpush1.xpose.msra.mxu0 0.0
    %882 = vmatprep.subr.mxu0 0.0
    %883 = vmatpush1.xpose.msra.mxu0 0.0
    %884 = vmatprep.subr.mxu0 0.0
    %885 = vmatpush1.xpose.msra.mxu0 0.0
    %886 = vmatprep.subr.mxu0 0.0
    %887 = vmatpush1.xpose.msra.mxu0 0.0
    %888 = vmatprep.subr.mxu0 0.0
    %889 = vmatpush1.xpose.msra.mxu0 0.0
    %890 = vmatprep.subr.mxu0 0.0
    %891 = vmatpush1.xpose.msra.mxu0 0.0
    %892 = vmatprep.subr.mxu0 0.0
    %893 = vmatpush1.xpose.msra.mxu0 0.0
    %894 = vmatprep.subr.mxu0 0.0
    %895 = vmatpush1.xpose.msra.mxu0 0.0
    %896 = vmatprep.subr.mxu0 0.0
    %897 = vmatpush1.xpose.msra.mxu0 0.0
    %898 = vmatprep.subr.mxu0 0.0
    %899 = vmatpush1.xpose.msra.mxu0 0.0
    %900 = vmatprep.subr.mxu0 0.0
    %901 = vmatpush1.xpose.msra.mxu0 0.0
    %902 = vmatprep.subr.mxu0 0.0
    %903 = vmatpush1.xpose.msra.mxu0 0.0
    %904 = vmatprep.subr.mxu0 0.0
    %905 = vmatpush1.xpose.msra.mxu0 0.0
    %906 = vmatprep.subr.mxu0 0.0
    %907 = vmatpush1.xpose.msra.mxu0 0.0
    %908 = vmatprep.subr.mxu0 0.0
    %909 = vmatpush1.xpose.msra.mxu0 0.0
    %910 = vmatprep.subr.mxu0 0.0
    %911 = vmatpush1.xpose.msra.mxu0 0.0
    %912 = vmatprep.subr.mxu0 0.0
    %913 = vmatpush1.xpose.msra.mxu0 0.0
    %914 = vmatprep.subr.mxu0 0.0
    %915 = vmatpush1.xpose.msra.mxu0 0.0
    %916 = vmatprep.mubr.f32.mxu0 0.0
    %917 = vmatmul.mubr.f32.gmra.mrb[0].mxu0 %v850
    %v918 = vpop.f32.mrb[0].mxu0
    %v919 = vadd.f32 0.0, %v918
    %v920 = vpop.f32.mrb[0].mxu0
    %921 = vdwg.mxu0
    %v922 = vlaneseq
    %v923 = vshrl.u32 %v922, 7
    %v924 = vsub.s32 0, %v923
    %v925 = vrot.slane %v919, %v924
    %v926 = vadd.f32 %v845, %v925
    %v927 = vadd.f32 %v848, %v925
    %s928 = sld [smem:[#allocation2 + $0x180]]
    %s929 = scalar_lea.vmem [#allocation6], 96
    %v930 = vld [vmem:[%s929] sm:$0xff]
    %v931 = vld [vmem:[%s929 + $0x8] sm:$0xff]
    %v932 = vstv %s928
    %v933 = vmul.f32 %v932, %v930
    %v934 = vmul.f32 %v932, %v931
    %v935 = vadd.f32 %v926, %v933
    %v936 = vadd.f32 %v927, %v934
    %s937 = sld [smem:[#allocation2 + $0x181]]
    %s938 = scalar_lea.vmem [#allocation6], 112
    %v939 = vld [vmem:[%s938] sm:$0xff]
    %v940 = vld [vmem:[%s938 + $0x8] sm:$0xff]
    %v941 = vstv %s937
    %v942 = vmul.f32 %v941, %v939
    %v943 = vmul.f32 %v941, %v940
    %v944 = vadd.f32 %v935, %v942
    %v945 = vadd.f32 %v936, %v943
    %vm946 = vcmp.ge.f32.partialorder %v944, 0.0
    %vm947 = vcmp.ge.f32.partialorder %v945, 0.0
    %v948 = vmul.f32 %v944, 0.2
    %v949 = vmul.f32 %v945, 0.2
    %v950 = vsel %vm946, %v944, %v948
    %v951 = vsel %vm947, %v945, %v949
    %v952 = vsel %vm143, %v950, -1e+30
    %v953 = vsel %vm144, %v951, -1e+30
    %v954 = vsel %vm270, %v952, -inf
    %955 = vmax.xlane.f32.xlu0 %v954
    %v956 = vpop.xlane.xlu0 %955
    %v957 = vsel %vm270, %v953, -inf
    %958 = vmax.xlane.f32.xlu0 %v957
    %v959 = vpop.xlane.xlu0 %958
    %v960 = vsub.f32 %v952, %v956
    %v961 = vsub.f32 %v953, %v959
    %v962 = vmul.f32 %v960, 1.442695
    %v963 = vpow.pop %v962
    %v964 = vmul.f32 %v961, 1.442695
    %v965 = vpow.pop %v964
    %v966 = vsel %vm270, %v963, 0.0
    %967 = vadd.xlane.f32.xlu0 %v966
    %v968 = vpop.xlane.xlu0 %967
    %v969 = vsel %vm270, %v965, 0.0
    %970 = vadd.xlane.f32.xlu0 %v969
    %v971 = vpop.xlane.xlu0 %970
    %v972 = vrcp.pop %v968
    %v973 = vmul.f32 %v963, %v972
    %v974 = vrcp.pop %v971
    %v975 = vmul.f32 %v965, %v974
    %vm976 = vcmp.ge.s32.totalorder %v146, 24
    %vm977 = vcmp.lt.s32.totalorder %v146, 32
    %vm978 = vmand %vm976, %vm977
    %v979 = vsel %vm978, 1, 0
    %vm980 = vcmp.eq.s32.totalorder %v979, 1
    %v981 = vsel %vm980, %v131, 0.0
    %v982 = vsel %vm980, %v136, 0.0
    %v984 = vsel %vm270, %v973, 0
    %v987 = vsel %vm270, %v975, 0
    %989 = vmatprep.subr.mxu0 0.0
    %990 = vmatpush1.msra.mxu0 %v981
    %991 = vmatprep.subr.mxu0 0.0
    %992 = vmatpush1.msra.mxu0 %v982
    %993 = vmatprep.subr.mxu0 0.0
    %994 = vmatpush1.msra.mxu0 0.0
    %995 = vmatprep.subr.mxu0 0.0
    %996 = vmatpush1.msra.mxu0 0.0
    %997 = vmatprep.subr.mxu0 0.0
    %998 = vmatpush1.msra.mxu0 0.0
    %999 = vmatprep.subr.mxu0 0.0
    %1000 = vmatpush1.msra.mxu0 0.0
    %1001 = vmatprep.subr.mxu0 0.0
    %1002 = vmatpush1.msra.mxu0 0.0
    %1003 = vmatprep.subr.mxu0 0.0
    %1004 = vmatpush1.msra.mxu0 0.0
    %1005 = vmatprep.subr.mxu0 0.0
    %1006 = vmatpush1.msra.mxu0 0.0
    %1007 = vmatprep.subr.mxu0 0.0
    %1008 = vmatpush1.msra.mxu0 0.0
    %1009 = vmatprep.subr.mxu0 0.0
    %1010 = vmatpush1.msra.mxu0 0.0
    %1011 = vmatprep.subr.mxu0 0.0
    %1012 = vmatpush1.msra.mxu0 0.0
    %1013 = vmatprep.subr.mxu0 0.0
    %1014 = vmatpush1.msra.mxu0 0.0
    %1015 = vmatprep.subr.mxu0 0.0
    %1016 = vmatpush1.msra.mxu0 0.0
    %1017 = vmatprep.subr.mxu0 0.0
    %1018 = vmatpush1.msra.mxu0 0.0
    %1019 = vmatprep.subr.mxu0 0.0
    %1020 = vmatpush1.msra.mxu0 0.0
    %1021 = vmatprep.subr.mxu0 0.0
    %1022 = vmatpush1.msra.mxu0 0.0
    %1023 = vmatprep.subr.mxu0 0.0
    %1024 = vmatpush1.msra.mxu0 0.0
    %1025 = vmatprep.subr.mxu0 0.0
    %1026 = vmatpush1.msra.mxu0 0.0
    %1027 = vmatprep.subr.mxu0 0.0
    %1028 = vmatpush1.msra.mxu0 0.0
    %1029 = vmatprep.subr.mxu0 0.0
    %1030 = vmatpush1.msra.mxu0 0.0
    %1031 = vmatprep.subr.mxu0 0.0
    %1032 = vmatpush1.msra.mxu0 0.0
    %1033 = vmatprep.subr.mxu0 0.0
    %1034 = vmatpush1.msra.mxu0 0.0
    %1035 = vmatprep.subr.mxu0 0.0
    %1036 = vmatpush1.msra.mxu0 0.0
    %1037 = vmatprep.subr.mxu0 0.0
    %1038 = vmatpush1.msra.mxu0 0.0
    %1039 = vmatprep.subr.mxu0 0.0
    %1040 = vmatpush1.msra.mxu0 0.0
    %1041 = vmatprep.subr.mxu0 0.0
    %1042 = vmatpush1.msra.mxu0 0.0
    %1043 = vmatprep.subr.mxu0 0.0
    %1044 = vmatpush1.msra.mxu0 0.0
    %1045 = vmatprep.subr.mxu0 0.0
    %1046 = vmatpush1.msra.mxu0 0.0
    %1047 = vmatprep.subr.mxu0 0.0
    %1048 = vmatpush1.msra.mxu0 0.0
    %1049 = vmatprep.subr.mxu0 0.0
    %1050 = vmatpush1.msra.mxu0 0.0
    %1051 = vmatprep.subr.mxu0 0.0
    %1052 = vmatpush1.msra.mxu0 0.0
    %1053 = vmatprep.mubr.f32.mxu0 0.0
    %1054 = vmatmul.mubr.f32.gmra.mrb[0].mxu0 %v984
    %v1055 = vpop.f32.mrb[0].mxu0
    %v1056 = vadd.f32 0.0, %v1055
    %v1057 = vpop.f32.mrb[0].mxu0
    %1058 = vmatprep.mubr.f32.mxu0 0.0
    %1059 = vmatmul.mubr.f32.gmra.mrb[0].mxu0 %v987
    %v1060 = vpop.f32.mrb[0].mxu0
    %v1061 = vadd.f32 0.0, %v1060
    %v1062 = vpop.f32.mrb[0].mxu0
    %1063 = vdwg.mxu0
    %v1064 = vadd.f32 %v835, %v1056
    %v1065 = vadd.f32 %v836, %v1061
    %vm1066 = vcmp.gt.f32.partialorder %v1064, 0.0
    %vm1067 = vcmp.gt.f32.partialorder %v1065, 0.0
    %v1068 = vmin.f32 %v1064, 0.0
    %v1069 = vmin.f32 %v1065, 0.0
    %v1070 = vmul.f32 %v1068, 1.442695
    %v1071 = vpow.pop %v1070
    %v1072 = vmul.f32 %v1069, 1.442695
    %v1073 = vpow.pop %v1072
    %v1074 = vsub.f32 %v1071, 1.0
    %v1075 = vsub.f32 %v1073, 1.0
    %v1076 = vsel %vm1066, %v1064, %v1074
    %v1077 = vsel %vm1067, %v1065, %v1075
    %1078 = vst.msk [vmem:[#allocation7] sm:$0xff] %vm153, %v1076
    %1079 = vst.msk [vmem:[#allocation7 + $0x8] sm:$0xff] %vm153, %v1077
    // Predicated region
    $region38: #{tpu_custom_call.1} parent=1 // pred_check
      _
    $region39: #{tpu_custom_call.1} parent=1 // pred_check_branch
      %1081 = sbr.rel (0) target = $region41
    $region40: #{tpu_custom_call.1} parent=1 // pred_region
      %s1083 = ssub.s32 256, 256
      %1084 = vsyncadd [#allocation4], %s1083
      %s1085 = sshll.u32 [#allocation7], 4
      %s1086 = int_to_ptr.vmem [resolvable:$true] %s1085
      %1091 = dma.vmem_to_hbm [thread:$0]  %s1086, 256, %s7, [#allocation4], 128, 128, 8
    $region41: #{tpu_custom_call.1} parent=1 // pred_fallthru
      _
    // Predicated region
    $region42: #{tpu_custom_call.1} parent=1 // pred_check
      _
    $region43: #{tpu_custom_call.1} parent=1 // pred_check_branch
      %1093 = sbr.rel (0) target = $region45
    $region44: #{tpu_custom_call.1} parent=1 // pred_region
      %1094 = dma.done [#allocation4], 256
    $region45: #{tpu_custom_call.1} parent=1 // pred_fallthru
      _
    %1095 = vsyncpa [#allocation3], 1
    %1096 = vsyncpa [#allocation4], 1
    %1097 = vsyncpa [#allocation5], 1

</llo_original>
